<compile_context>
chip_gen: v7x
topology: tpu7x:2x2x1
jax: 0.10.0
libtpu: 0.0.40
codegen_flags: <defaults>
</compile_context>

<pallas_src>
import math

import jax
import jax.numpy as jnp
from jax.experimental import pallas as pl
from jax.experimental.pallas import tpu as pltpu


def _round_up(x, m):
    return ((x + m - 1) // m) * m


def _matmul_kernel(a_ref, b_ref, o_ref, acc_ref):
    # Standard K-tiled matmul with resident f32 accumulator (P1 + P3).
    @pl.when(pl.program_id(2) == 0)
    def _():
        acc_ref[...] = jnp.zeros_like(acc_ref)

    acc_ref[...] += jnp.dot(a_ref[...], b_ref[...],
                            preferred_element_type=jnp.float32)

    @pl.when(pl.program_id(2) == pl.num_programs(2) - 1)
    def _():
        o_ref[...] = acc_ref[...].astype(o_ref.dtype)


def _pallas_matmul(a, b, out_dtype=jnp.float32):
    """C = A @ B as a lane-dense tiled Pallas matmul with f32 accumulation."""
    M, K = a.shape
    K2, N = b.shape
    assert K == K2, (a.shape, b.shape)

    # Largest MXU-shaped tiles that make sense, capped at the (hardware-rounded)
    # array extents.  256x512 + 512x256 + 2x 256x256 f32 (double buffered inputs)
    # is ~2.8 MiB -> fits every chip, including v7x's 64 MiB physical VMEM.
    tm = min(256, _round_up(M, 8))
    tk = min(512, _round_up(K, 128))
    tn = min(256, _round_up(N, 128))

    Mp, Kp, Np = _round_up(M, tm), _round_up(K, tk), _round_up(N, tn)
    if (Mp, Kp) != (M, K):
        a = jnp.pad(a, ((0, Mp - M), (0, Kp - K)))
    if (Kp, Np) != (K, N):
        b = jnp.pad(b, ((0, Kp - K), (0, Np - N)))

    out = pl.pallas_call(
        _matmul_kernel,
        out_shape=jax.ShapeDtypeStruct((Mp, Np), out_dtype),
        grid_spec=pltpu.PrefetchScalarGridSpec(
            num_scalar_prefetch=0,
            grid=(Mp // tm, Np // tn, Kp // tk),
            in_specs=[
                pl.BlockSpec((tm, tk), lambda i, j, k: (i, k)),
                pl.BlockSpec((tk, tn), lambda i, j, k: (k, j)),
            ],
            out_specs=pl.BlockSpec((tm, tn), lambda i, j, k: (i, j)),
            scratch_shapes=[pltpu.VMEM((tm, tn), jnp.float32)],
        ),
        compiler_params=pltpu.CompilerParams(
            dimension_semantics=("parallel", "parallel", "arbitrary"),
            vmem_limit_bytes=32 * 1024 * 1024,
        ),
    )(a, b)
    return out[:M, :N]


def eig_forward(h, s_oh, s_inv_oh):
    """Solver for the generalized eigenvalue problem HC = SCE.

    Mirrors dpyscf `eig.forward`:
      A     = einsum('ij,...jk,kl->...il', s_oh, h, s_inv_oh)
      e, c' = symeig(A, eigenvectors=True, upper=False)
      c     = einsum('ij,...jk->...ik', s_inv_oh, c')
    """
    in_dtype = h.dtype
    batch_shape = h.shape[:-2]
    N = h.shape[-1]
    B = int(math.prod(batch_shape)) if batch_shape else 1

    # Keep the eigh input in float32 regardless of the input dtype.
    hb = h.reshape((B, N, N)).astype(jnp.float32)
    s_oh_f = s_oh.astype(jnp.float32)
    s_inv_f = s_inv_oh.astype(jnp.float32)

    # ---- A[b] = s_oh @ h[b] @ s_inv_oh, batch folded onto the lane dim ----
    # Step 1: T_cols = s_oh @ [h[0] | h[1] | ...]           -> (N, B*N)
    h_cols = jnp.transpose(hb, (1, 0, 2)).reshape(N, B * N)
    t_cols = _pallas_matmul(s_oh_f, h_cols)
    # Step 2: A_rows = [T[0]; T[1]; ...] @ s_inv_oh         -> (B*N, N)
    t_rows = jnp.transpose(t_cols.reshape(N, B, N), (1, 0, 2)).reshape(B * N, N)
    a = _pallas_matmul(t_rows, s_inv_f).reshape(B, N, N)

    # TODO(synk): the symmetric eigendecomposition has no clean Pallas
    # equivalent (iterative LAPACK-style algorithm); kept in plain JAX.
    # symmetrize_input=False + UPLO='L' matches torch.symeig(upper=False).
    e, cprime = jnp.linalg.eigh(a, symmetrize_input=False)

    # ---- C[b] = s_inv_oh @ c'[b], batch folded onto the lane dim ----
    c_cols = jnp.transpose(cprime, (1, 0, 2)).reshape(N, B * N)
    c_cols = _pallas_matmul(s_inv_f, c_cols)
    c = jnp.transpose(c_cols.reshape(N, B, N), (1, 0, 2)).reshape(B, N, N)

    e = e.reshape(batch_shape + (N,)).astype(in_dtype)
    c = c.reshape(batch_shape + (N, N)).astype(in_dtype)
    return e, c


if __name__ == "__main__":
    B, N = 4, 32
    key = jax.random.PRNGKey(0)
    k1, k2 = jax.random.split(key)

    # Deterministic synthetic inputs.
    # Symmetric "Hamiltonian" batch.
    hr = jax.random.normal(k1, (B, N, N), dtype=jnp.float32)
    h = 0.5 * (hr + jnp.swapaxes(hr, -1, -2))

    # Symmetric positive-definite overlap S; s_oh / s_inv_oh are symmetric roots.
    m = jax.random.normal(k2, (N, N), dtype=jnp.float32)
    S = m @ m.T + N * jnp.eye(N, dtype=jnp.float32)
    w, v = jnp.linalg.eigh(S)
    s_inv_oh = (v * (1.0 / jnp.sqrt(w))) @ v.T   # S^{-1/2}
    s_oh = s_inv_oh                              # same transform on both sides

    e, c = jax.jit(eig_forward)(h, s_oh, s_inv_oh)
    jax.block_until_ready((e, c))

    assert e.shape == (B, N) and c.shape == (B, N, N)

    # Pure-JAX reference checks (sign/ordering-robust).
    a_ref = jnp.einsum('ij,bjk,kl->bil', s_oh, h, s_inv_oh)
    e_ref = jnp.linalg.eigvalsh(a_ref)
    err_e = float(jnp.max(jnp.abs(e - e_ref)))
    assert err_e < 1e-3, f"eigenvalue mismatch: {err_e}"

    # Generalized eigen-equation residual: S^{-1} H C ~= C E  (S^{-1} = s_inv_oh^2).
    s_inv_full = s_inv_oh @ s_inv_oh
    lhs = jnp.einsum('ij,bjk->bik', s_inv_full,
                     jnp.einsum('bij,bjk->bik', h, c))
    rhs = c * e[:, None, :]
    rel = float(jnp.max(jnp.abs(lhs - rhs)) / (jnp.max(jnp.abs(rhs)) + 1e-30))
    assert rel < 1e-3, f"generalized eigen residual too large: {rel}"

    print("KERNEL_OK")
</pallas_src>

<mosaic_0001>
module attributes {stable_mosaic.version = 11 : i64} {
  func.func @_matmul_kernel(%arg0: i32, %arg1: i32, %arg2: i32, %arg3: memref<32x128xf32, #tpu.memory_space<vmem>>, %arg4: memref<128x128xf32, #tpu.memory_space<vmem>>, %arg5: memref<32x128xf32, #tpu.memory_space<vmem>>, %arg6: memref<32x128xf32, #tpu.memory_space<vmem>>) attributes {dimension_semantics = [#tpu.dimension_semantics<parallel>, #tpu.dimension_semantics<parallel>, #tpu.dimension_semantics<arbitrary>], iteration_bounds = array<i64: 1, 1, 1>, scalar_prefetch = 0 : i64, scratch_operands = 1 : i64, tpu.core_type = #tpu.core_type<tc>, window_params = [{transform_indices = @transform_0, window_bounds = array<i64: 32, 128>}, {transform_indices = @transform_1, window_bounds = array<i64: 128, 128>}, {transform_indices = @transform_2, window_bounds = array<i64: 32, 128>}]} {
    %c0_i32 = arith.constant 0 : i32
    %0 = arith.cmpi eq, %arg2, %c0_i32 : i32
    %1 = arith.extui %0 : i1 to i32
    %c0_i32_0 = arith.constant 0 : i32
    %2 = arith.cmpi ne, %1, %c0_i32_0 : i32
    scf.if %2 {
      %cst_10 = arith.constant 0.000000e+00 : f32
      %12 = vector.broadcast %cst_10 : f32 to vector<32x128xf32>
      %c0_11 = arith.constant 0 : index
      %c0_12 = arith.constant 0 : index
      %13 = vector.load %arg6[%c0_11, %c0_12] : memref<32x128xf32, #tpu.memory_space<vmem>>, vector<32x128xf32>
      tpu.vector_store %arg6[%c0_11, %c0_12], %12 {strides = array<i32>} : memref<32x128xf32, #tpu.memory_space<vmem>>, vector<32x128xf32>,
    } else {
    }
    %c0 = arith.constant 0 : index
    %c0_1 = arith.constant 0 : index
    %3 = vector.load %arg6[%c0, %c0_1] : memref<32x128xf32, #tpu.memory_space<vmem>>, vector<32x128xf32>
    %c0_2 = arith.constant 0 : index
    %c0_3 = arith.constant 0 : index
    %4 = vector.load %arg3[%c0_2, %c0_3] : memref<32x128xf32, #tpu.memory_space<vmem>>, vector<32x128xf32>
    %c0_4 = arith.constant 0 : index
    %c0_5 = arith.constant 0 : index
    %5 = vector.load %arg4[%c0_4, %c0_5] : memref<128x128xf32, #tpu.memory_space<vmem>>, vector<128x128xf32>
    %cst = arith.constant dense<0.000000e+00> : vector<32x128xf32>
    %6 = tpu.matmul %4, %5, %cst {dimension_numbers = #tpu.dot_dimension_numbers<[1], [0], [0], [1], [0, 0, 1, 1], [], []>} : vector<32x128xf32>, vector<128x128xf32>, vector<32x128xf32> -> vector<32x128xf32>
    %7 = arith.addf %3, %6 : vector<32x128xf32>
    %c0_6 = arith.constant 0 : index
    %c0_7 = arith.constant 0 : index
    %8 = vector.load %arg6[%c0_6, %c0_7] : memref<32x128xf32, #tpu.memory_space<vmem>>, vector<32x128xf32>
    tpu.vector_store %arg6[%c0_6, %c0_7], %7 {strides = array<i32>} : memref<32x128xf32, #tpu.memory_space<vmem>>, vector<32x128xf32>,
    %c0_i32_8 = arith.constant 0 : i32
    %9 = arith.cmpi eq, %arg2, %c0_i32_8 : i32
    %10 = arith.extui %9 : i1 to i32
    %c0_i32_9 = arith.constant 0 : i32
    %11 = arith.cmpi ne, %10, %c0_i32_9 : i32
    scf.if %11 {
      %c0_10 = arith.constant 0 : index
      %c0_11 = arith.constant 0 : index
      %12 = vector.load %arg6[%c0_10, %c0_11] : memref<32x128xf32, #tpu.memory_space<vmem>>, vector<32x128xf32>
      %c0_12 = arith.constant 0 : index
      %c0_13 = arith.constant 0 : index
      %13 = vector.load %arg5[%c0_12, %c0_13] : memref<32x128xf32, #tpu.memory_space<vmem>>, vector<32x128xf32>
      tpu.vector_store %arg5[%c0_12, %c0_13], %12 {strides = array<i32>} : memref<32x128xf32, #tpu.memory_space<vmem>>, vector<32x128xf32>,
    } else {
    }
    return
  }
  func.func @transform_0(%arg0: i32, %arg1: i32, %arg2: i32) -> (i32, i32) {
    %c0_i32 = arith.constant 0 : i32
    return %arg0, %arg2 : i32, i32
  }
  func.func @transform_1(%arg0: i32, %arg1: i32, %arg2: i32) -> (i32, i32) {
    %c0_i32 = arith.constant 0 : i32
    return %arg2, %arg1 : i32, i32
  }
  func.func @transform_2(%arg0: i32, %arg1: i32, %arg2: i32) -> (i32, i32) {
    %c0_i32 = arith.constant 0 : i32
    return %arg0, %arg1 : i32, i32
  }
}

module attributes {stable_mosaic.version = 11 : i64} {
  func.func @_matmul_kernel(%arg0: i32, %arg1: i32, %arg2: i32, %arg3: memref<128x128xf32, #tpu.memory_space<vmem>>, %arg4: memref<128x128xf32, #tpu.memory_space<vmem>>, %arg5: memref<128x128xf32, #tpu.memory_space<vmem>>, %arg6: memref<128x128xf32, #tpu.memory_space<vmem>>) attributes {dimension_semantics = [#tpu.dimension_semantics<parallel>, #tpu.dimension_semantics<parallel>, #tpu.dimension_semantics<arbitrary>], iteration_bounds = array<i64: 1, 1, 1>, scalar_prefetch = 0 : i64, scratch_operands = 1 : i64, tpu.core_type = #tpu.core_type<tc>, window_params = [{transform_indices = @transform_0, window_bounds = array<i64: 128, 128>}, {transform_indices = @transform_1, window_bounds = array<i64: 128, 128>}, {transform_indices = @transform_2, window_bounds = array<i64: 128, 128>}]} {
    %c0_i32 = arith.constant 0 : i32
    %0 = arith.cmpi eq, %arg2, %c0_i32 : i32
    %1 = arith.extui %0 : i1 to i32
    %c0_i32_0 = arith.constant 0 : i32
    %2 = arith.cmpi ne, %1, %c0_i32_0 : i32
    scf.if %2 {
      %cst_10 = arith.constant 0.000000e+00 : f32
      %12 = vector.broadcast %cst_10 : f32 to vector<128x128xf32>
      %c0_11 = arith.constant 0 : index
      %c0_12 = arith.constant 0 : index
      %13 = vector.load %arg6[%c0_11, %c0_12] : memref<128x128xf32, #tpu.memory_space<vmem>>, vector<128x128xf32>
      tpu.vector_store %arg6[%c0_11, %c0_12], %12 {strides = array<i32>} : memref<128x128xf32, #tpu.memory_space<vmem>>, vector<128x128xf32>,
    } else {
    }
    %c0 = arith.constant 0 : index
    %c0_1 = arith.constant 0 : index
    %3 = vector.load %arg6[%c0, %c0_1] : memref<128x128xf32, #tpu.memory_space<vmem>>, vector<128x128xf32>
    %c0_2 = arith.constant 0 : index
    %c0_3 = arith.constant 0 : index
    %4 = vector.load %arg3[%c0_2, %c0_3] : memref<128x128xf32, #tpu.memory_space<vmem>>, vector<128x128xf32>
    %c0_4 = arith.constant 0 : index
    %c0_5 = arith.constant 0 : index
    %5 = vector.load %arg4[%c0_4, %c0_5] : memref<128x128xf32, #tpu.memory_space<vmem>>, vector<128x128xf32>
    %cst = arith.constant dense<0.000000e+00> : vector<128x128xf32>
    %6 = tpu.matmul %4, %5, %cst {dimension_numbers = #tpu.dot_dimension_numbers<[1], [0], [0], [1], [0, 0, 1, 1], [], []>} : vector<128x128xf32>, vector<128x128xf32>, vector<128x128xf32> -> vector<128x128xf32>
    %7 = arith.addf %3, %6 : vector<128x128xf32>
    %c0_6 = arith.constant 0 : index
    %c0_7 = arith.constant 0 : index
    %8 = vector.load %arg6[%c0_6, %c0_7] : memref<128x128xf32, #tpu.memory_space<vmem>>, vector<128x128xf32>
    tpu.vector_store %arg6[%c0_6, %c0_7], %7 {strides = array<i32>} : memref<128x128xf32, #tpu.memory_space<vmem>>, vector<128x128xf32>,
    %c0_i32_8 = arith.constant 0 : i32
    %9 = arith.cmpi eq, %arg2, %c0_i32_8 : i32
    %10 = arith.extui %9 : i1 to i32
    %c0_i32_9 = arith.constant 0 : i32
    %11 = arith.cmpi ne, %10, %c0_i32_9 : i32
    scf.if %11 {
      %c0_10 = arith.constant 0 : index
      %c0_11 = arith.constant 0 : index
      %12 = vector.load %arg6[%c0_10, %c0_11] : memref<128x128xf32, #tpu.memory_space<vmem>>, vector<128x128xf32>
      %c0_12 = arith.constant 0 : index
      %c0_13 = arith.constant 0 : index
      %13 = vector.load %arg5[%c0_12, %c0_13] : memref<128x128xf32, #tpu.memory_space<vmem>>, vector<128x128xf32>
      tpu.vector_store %arg5[%c0_12, %c0_13], %12 {strides = array<i32>} : memref<128x128xf32, #tpu.memory_space<vmem>>, vector<128x128xf32>,
    } else {
    }
    return
  }
  func.func @transform_0(%arg0: i32, %arg1: i32, %arg2: i32) -> (i32, i32) {
    %c0_i32 = arith.constant 0 : i32
    return %arg0, %arg2 : i32, i32
  }
  func.func @transform_1(%arg0: i32, %arg1: i32, %arg2: i32) -> (i32, i32) {
    %c0_i32 = arith.constant 0 : i32
    return %arg2, %arg1 : i32, i32
  }
  func.func @transform_2(%arg0: i32, %arg1: i32, %arg2: i32) -> (i32, i32) {
    %c0_i32 = arith.constant 0 : i32
    return %arg0, %arg1 : i32, i32
  }
}

</mosaic_0001>

<llo_original>
// kernel: custom-call.2
$region0: #{custom-call.2}
  %s0 = inlined_call_operand.vmem [shape: f32[4,16,16], index: 0, kind: input, shape index: {}]
  %s1 = inlined_call_operand.vmem [shape: f32[4,16,16], index: 1, kind: input, shape index: {}]
  %s2 = inlined_call_operand.vmem [shape: f32[4,16,16], index: 2, kind: input, shape index: {}]
  %s3 = inlined_call_operand.vmem [shape: f32[4,16,16], index: 3, kind: input, shape index: {}]
  %s4 = inlined_call_operand.vmem [shape: f32[4,16], index: 4, kind: output, shape index: {0}]
  %s5 = inlined_call_operand.vmem [shape: f32[4,16], index: 5, kind: output, shape index: {1}]
  %s6 = inlined_call_operand.vmem [shape: f32[4,16,16], index: 6, kind: output, shape index: {2}]
  %s7 = inlined_call_operand.vmem [shape: f32[4,16,16], index: 7, kind: output, shape index: {3}]
  %s8 = inlined_call_operand.vmem [shape: f32[4,16,16], index: 8, kind: output, shape index: {4}]
  %s9 = inlined_call_operand.vmem [shape: f32[4,16,16], index: 9, kind: output, shape index: {5}]
  %10 = xla_tuple %s4, %s5, %s6, %s7, %s8, %s9
  $region1: #{custom-call.2} parent=0
    #allocation0 [shape = 'u8[16384]{0}', space=vmem, size = 0x4000, scoped, tag = 'operand span for operand 0']
    #allocation1 [shape = 'u8[16384]{0}', space=vmem, size = 0x4000, scoped, tag = 'operand span for operand 1']
    #allocation2 [shape = 'u8[16384]{0}', space=vmem, size = 0x4000, scoped, tag = 'operand span for operand 2']
    #allocation3 [shape = 'u8[16384]{0}', space=vmem, size = 0x4000, scoped, tag = 'operand span for operand 3']
    #allocation4 [shape = 'u8[4096]{0}', space=vmem, size = 0x1000, scoped, tag = 'operand span for operand 4']
    #allocation5 [shape = 'u8[4096]{0}', space=vmem, size = 0x1000, scoped, tag = 'packed  for operand 4']
    #allocation6 [shape = 'u8[4096]{0}', space=vmem, size = 0x1000, scoped, tag = 'operand span for operand 5']
    #allocation7 [shape = 'u8[4096]{0}', space=vmem, size = 0x1000, scoped, tag = 'packed  for operand 5']
    #allocation8 [shape = 'u8[16384]{0}', space=vmem, size = 0x4000, scoped, tag = 'operand span for operand 6']
    #allocation9 [shape = 'u8[16384]{0}', space=vmem, size = 0x4000, scoped, tag = 'operand span for operand 7']
    #allocation10 [shape = 'u8[16384]{0}', space=vmem, size = 0x4000, scoped, tag = 'operand span for operand 8']
    #allocation11 [shape = 'u8[16384]{0}', space=vmem, size = 0x4000, scoped, tag = 'operand span for operand 9']
    loop: start=0, step=1, limit=6
    $region2: #{custom-call.2} parent=1 // loop_pre_header
      _
    $region3: #{custom-call.2} parent=1 // loop_header
      %s12 = sphi 0, %s16
      %p13 = scmp.ge.s32.totalorder %s12, 6
      %s24 = sphi 0, %s26
      %s27 = sphi 0, %s24
      %s28 = sphi 0, %s27
      %s44 = sphi 0, %s28
      %s52 = sphi 0, %s54
      %s55 = sphi 0, %s52
      %s56 = sphi 0, %s55
      %s72 = sphi 0, %s56
    $region4: #{custom-call.2} parent=1 // loop_header_branch
      %15 = sbr.rel (%p13) target = $region8
    $region5: #{custom-call.2} parent=1 // loop_body
      %s17 = ssub.s32 %s12, 1
      %s18 = ssub.s32 %s12, 2
      %s19 = sadd.s32 %s12, 1
      %s20 = sshrl.u32 %s12, 3
      %s21 = sshrl.u32 %s19, 3
      %s22 = ssub.s32 %s20, %s21
      %p23 = scmp.eq.s32.totalorder %s22, 0
      %s25 = sadd.s32 %s24, 1
      %s26 = scalar_select %p23, %s24, %s25
      %p29 = pneg %p23
      %p30 = scmp.eq.s32.totalorder %s12, 3
      %p31 = por %p29, %p30
      %p32 = scmp.ne.s32.totalorder %s24, %s27
      %p33 = scmp.eq.s32.totalorder %s12, 0
      %p34 = por %p32, %p33
      %p35 = scmp.ne.s32.totalorder %s24, %s27
      %p36 = scmp.eq.s32.totalorder %s17, 3
      %p37 = por %p35, %p36
      %p38 = scmp.ne.s32.totalorder %s27, %s28
      %p39 = scmp.eq.s32.totalorder %s17, 0
      %p40 = por %p38, %p39
      %p41 = scmp.ne.s32.totalorder %s27, %s28
      %p42 = scmp.eq.s32.totalorder %s18, 3
      %p43 = por %p41, %p42
      %p45 = scmp.ne.s32.totalorder %s28, %s44
      %p46 = scmp.eq.s32.totalorder %s18, 0
      %p47 = por %p45, %p46
      %s48 = sshrl.u32 %s12, 3
      %s49 = sshrl.u32 %s19, 3
      %s50 = ssub.s32 %s48, %s49
      %p51 = scmp.eq.s32.totalorder %s50, 0
      %s53 = sadd.s32 %s52, 1
      %s54 = scalar_select %p51, %s52, %s53
      %p57 = pneg %p51
      %p58 = scmp.eq.s32.totalorder %s12, 3
      %p59 = por %p57, %p58
      %p60 = scmp.ne.s32.totalorder %s52, %s55
      %p61 = scmp.eq.s32.totalorder %s12, 0
      %p62 = por %p60, %p61
      %p63 = scmp.ne.s32.totalorder %s52, %s55
      %p64 = scmp.eq.s32.totalorder %s17, 3
      %p65 = por %p63, %p64
      %p66 = scmp.ne.s32.totalorder %s55, %s56
      %p67 = scmp.eq.s32.totalorder %s17, 0
      %p68 = por %p66, %p67
      %p69 = scmp.ne.s32.totalorder %s55, %s56
      %p70 = scmp.eq.s32.totalorder %s18, 3
      %p71 = por %p69, %p70
      %p73 = scmp.ne.s32.totalorder %s56, %s72
      %p74 = scmp.eq.s32.totalorder %s18, 0
      %p75 = por %p73, %p74
      %p76 = scmp.le.s32.totalorder 1, %s12
      %p77 = scmp.lt.s32.totalorder %s12, 5
      %p78 = pnand %p76, %p77
      %p79 = pneg %p78
      // Predicated region
      $region9: #{custom-call.2} parent=5 // pred_check
        _
      $region10: #{custom-call.2} parent=5 // pred_check_branch
        %81 = sbr.rel (%p78) target = $region12
      $region11: #{custom-call.2} parent=5 // pred_region
        %s82 = ssub.s32 %s12, 1
      $region12: #{custom-call.2} parent=5 // pred_fallthru
        _
      %p83 = scmp.lt.s32.totalorder %s12, 4
      // Predicated region
      $region13: #{custom-call.2} parent=5 // pred_check
        %p84 = pneg %p83
      $region14: #{custom-call.2} parent=5 // pred_check_branch
        %86 = sbr.rel (%p84) target = $region16
      $region15: #{custom-call.2} parent=5 // pred_region
        %s87 = sand.u32 %s12, 1
        %s88 = sand.u32 %s12, 1
        %s89 = smul.addr %s88, 16
        %s90 = scalar_lea.vmem [#allocation0], %s89
        %s91 = smul.addr %s12, 16
        %s92 = scalar_lea.vmem %s0, %s91
        // Predicated region
        $region17: #{custom-call.2} parent=15 // pred_check
          _
        $region18: #{custom-call.2} parent=15 // pred_check_branch
          %94 = sbr.rel (0) target = $region20
        $region19: #{custom-call.2} parent=15 // pred_region
          // Predicated region
          $region21: #{custom-call.2} parent=19 // pred_check
            _
          $region22: #{custom-call.2} parent=19 // pred_check_branch
            %96 = sbr.rel (0) target = $region24
          $region23: #{custom-call.2} parent=19 // pred_region
            loop: start=0, step=1, limit=1
            $region25: #{custom-call.2} parent=23 // loop_pre_header
              _
            $region26: #{custom-call.2} parent=23 // loop_header
              %s98 = sphi 0, %s102
              %p99 = scmp.ge.s32.totalorder %s98, 1
              %s103 = sphi %s92, %s92
              %s104 = sphi %s90, %s90
            $region27: #{custom-call.2} parent=23 // loop_header_branch
              %101 = sbr.rel (%p99) target = $region31
            $region28: #{custom-call.2} parent=23 // loop_body
              %v105 = vld [vmem:[%s103] sm:$0xff]
              %106 = vst [vmem:[%s104] sm:$0xff] %v105
              %v107 = vld [vmem:[%s103 + $0x8] sm:$0xff]
              %108 = vst [vmem:[%s104 + $0x8] sm:$0xff] %v107
            $region29: #{custom-call.2} parent=23 // loop_footer
              %s102 = sadd.s32 1, %s98
            $region30: #{custom-call.2} parent=23 // loop_footer_branch
              %97 = sbr.rel target = $region26
            $region31: #{custom-call.2} parent=23 // loop_exit
              _
          $region24: #{custom-call.2} parent=19 // pred_fallthru
            _
          // Predicated region
          $region32: #{custom-call.2} parent=19 // pred_check
            _
          $region33: #{custom-call.2} parent=19 // pred_check_branch
            %110 = sbr.rel target = $region35
          $region34: #{custom-call.2} parent=19 // pred_region
            _
          $region35: #{custom-call.2} parent=19 // pred_fallthru
            _
        $region20: #{custom-call.2} parent=15 // pred_fallthru
          _
        %111 = vnop
        %s112 = sand.u32 %s12, 1
        %s113 = sand.u32 %s12, 1
        %s114 = smul.addr %s113, 16
        %s115 = scalar_lea.vmem [#allocation1], %s114
        %s116 = smul.addr %s12, 16
        %s117 = scalar_lea.vmem %s1, %s116
        // Predicated region
        $region36: #{custom-call.2} parent=15 // pred_check
          _
        $region37: #{custom-call.2} parent=15 // pred_check_branch
          %119 = sbr.rel (0) target = $region39
        $region38: #{custom-call.2} parent=15 // pred_region
          // Predicated region
          $region40: #{custom-call.2} parent=38 // pred_check
            _
          $region41: #{custom-call.2} parent=38 // pred_check_branch
            %121 = sbr.rel (0) target = $region43
          $region42: #{custom-call.2} parent=38 // pred_region
            loop: start=0, step=1, limit=1
            $region44: #{custom-call.2} parent=42 // loop_pre_header
              _
            $region45: #{custom-call.2} parent=42 // loop_header
              %s123 = sphi 0, %s127
              %p124 = scmp.ge.s32.totalorder %s123, 1
              %s128 = sphi %s117, %s117
              %s129 = sphi %s115, %s115
            $region46: #{custom-call.2} parent=42 // loop_header_branch
              %126 = sbr.rel (%p124) target = $region50
            $region47: #{custom-call.2} parent=42 // loop_body
              %v130 = vld [vmem:[%s128] sm:$0xff]
              %131 = vst [vmem:[%s129] sm:$0xff] %v130
              %v132 = vld [vmem:[%s128 + $0x8] sm:$0xff]
              %133 = vst [vmem:[%s129 + $0x8] sm:$0xff] %v132
            $region48: #{custom-call.2} parent=42 // loop_footer
              %s127 = sadd.s32 1, %s123
            $region49: #{custom-call.2} parent=42 // loop_footer_branch
              %122 = sbr.rel target = $region45
            $region50: #{custom-call.2} parent=42 // loop_exit
              _
          $region43: #{custom-call.2} parent=38 // pred_fallthru
            _
          // Predicated region
          $region51: #{custom-call.2} parent=38 // pred_check
            _
          $region52: #{custom-call.2} parent=38 // pred_check_branch
            %135 = sbr.rel target = $region54
          $region53: #{custom-call.2} parent=38 // pred_region
            _
          $region54: #{custom-call.2} parent=38 // pred_fallthru
            _
        $region39: #{custom-call.2} parent=15 // pred_fallthru
          _
        %136 = vnop
        %s137 = sand.u32 %s12, 1
        %s138 = sand.u32 %s12, 1
        %s139 = smul.addr %s138, 16
        %s140 = scalar_lea.vmem [#allocation2], %s139
        %s141 = smul.addr %s12, 16
        %s142 = scalar_lea.vmem %s2, %s141
        // Predicated region
        $region55: #{custom-call.2} parent=15 // pred_check
          _
        $region56: #{custom-call.2} parent=15 // pred_check_branch
          %144 = sbr.rel (0) target = $region58
        $region57: #{custom-call.2} parent=15 // pred_region
          // Predicated region
          $region59: #{custom-call.2} parent=57 // pred_check
            _
          $region60: #{custom-call.2} parent=57 // pred_check_branch
            %146 = sbr.rel (0) target = $region62
          $region61: #{custom-call.2} parent=57 // pred_region
            loop: start=0, step=1, limit=1
            $region63: #{custom-call.2} parent=61 // loop_pre_header
              _
            $region64: #{custom-call.2} parent=61 // loop_header
              %s148 = sphi 0, %s152
              %p149 = scmp.ge.s32.totalorder %s148, 1
              %s153 = sphi %s142, %s142
              %s154 = sphi %s140, %s140
            $region65: #{custom-call.2} parent=61 // loop_header_branch
              %151 = sbr.rel (%p149) target = $region69
            $region66: #{custom-call.2} parent=61 // loop_body
              %v155 = vld [vmem:[%s153] sm:$0xff]
              %156 = vst [vmem:[%s154] sm:$0xff] %v155
              %v157 = vld [vmem:[%s153 + $0x8] sm:$0xff]
              %158 = vst [vmem:[%s154 + $0x8] sm:$0xff] %v157
            $region67: #{custom-call.2} parent=61 // loop_footer
              %s152 = sadd.s32 1, %s148
            $region68: #{custom-call.2} parent=61 // loop_footer_branch
              %147 = sbr.rel target = $region64
            $region69: #{custom-call.2} parent=61 // loop_exit
              _
          $region62: #{custom-call.2} parent=57 // pred_fallthru
            _
          // Predicated region
          $region70: #{custom-call.2} parent=57 // pred_check
            _
          $region71: #{custom-call.2} parent=57 // pred_check_branch
            %160 = sbr.rel target = $region73
          $region72: #{custom-call.2} parent=57 // pred_region
            _
          $region73: #{custom-call.2} parent=57 // pred_fallthru
            _
        $region58: #{custom-call.2} parent=15 // pred_fallthru
          _
        %161 = vnop
        %s162 = sand.u32 %s12, 1
        %s163 = sand.u32 %s12, 1
        %s164 = smul.addr %s163, 16
        %s165 = scalar_lea.vmem [#allocation3], %s164
        %s166 = smul.addr %s12, 16
        %s167 = scalar_lea.vmem %s3, %s166
        // Predicated region
        $region74: #{custom-call.2} parent=15 // pred_check
          _
        $region75: #{custom-call.2} parent=15 // pred_check_branch
          %169 = sbr.rel (0) target = $region77
        $region76: #{custom-call.2} parent=15 // pred_region
          // Predicated region
          $region78: #{custom-call.2} parent=76 // pred_check
            _
          $region79: #{custom-call.2} parent=76 // pred_check_branch
            %171 = sbr.rel (0) target = $region81
          $region80: #{custom-call.2} parent=76 // pred_region
            loop: start=0, step=1, limit=1
            $region82: #{custom-call.2} parent=80 // loop_pre_header
              _
            $region83: #{custom-call.2} parent=80 // loop_header
              %s173 = sphi 0, %s177
              %p174 = scmp.ge.s32.totalorder %s173, 1
              %s178 = sphi %s167, %s167
              %s179 = sphi %s165, %s165
            $region84: #{custom-call.2} parent=80 // loop_header_branch
              %176 = sbr.rel (%p174) target = $region88
            $region85: #{custom-call.2} parent=80 // loop_body
              %v180 = vld [vmem:[%s178] sm:$0xff]
              %181 = vst [vmem:[%s179] sm:$0xff] %v180
              %v182 = vld [vmem:[%s178 + $0x8] sm:$0xff]
              %183 = vst [vmem:[%s179 + $0x8] sm:$0xff] %v182
            $region86: #{custom-call.2} parent=80 // loop_footer
              %s177 = sadd.s32 1, %s173
            $region87: #{custom-call.2} parent=80 // loop_footer_branch
              %172 = sbr.rel target = $region83
            $region88: #{custom-call.2} parent=80 // loop_exit
              _
          $region81: #{custom-call.2} parent=76 // pred_fallthru
            _
          // Predicated region
          $region89: #{custom-call.2} parent=76 // pred_check
            _
          $region90: #{custom-call.2} parent=76 // pred_check_branch
            %185 = sbr.rel target = $region92
          $region91: #{custom-call.2} parent=76 // pred_region
            _
          $region92: #{custom-call.2} parent=76 // pred_fallthru
            _
        $region77: #{custom-call.2} parent=15 // pred_fallthru
          _
        %186 = vnop
      $region16: #{custom-call.2} parent=5 // pred_fallthru
        _
      %p187 = scmp.le.s32.totalorder 1, %s12
      %p188 = scmp.lt.s32.totalorder %s12, 5
      %p189 = pnand %p187, %p188
      %p190 = pneg %p189
      // Predicated region
      $region93: #{custom-call.2} parent=5 // pred_check
        _
      $region94: #{custom-call.2} parent=5 // pred_check_branch
        %192 = sbr.rel (%p189) target = $region96
      $region95: #{custom-call.2} parent=5 // pred_region
        #allocation12 [shape = 'f32[16,16]{1,0}', space=vmem, size = 0x2000, scoped, tag = 'a top-left matrix']
        #allocation13 [shape = 'f32[16,16]{1,0}', space=vmem, size = 0x2000, scoped, tag = 'a top-right matrix']
        #allocation14 [shape = 'f32[16,16]{1,0}', space=vmem, size = 0x2000, scoped, tag = 'a bottom-left matrix']
        #allocation15 [shape = 'f32[16,16]{1,0}', space=vmem, size = 0x2000, scoped, tag = 'a bottom-right matrix']
        %s193 = ssub.s32 %s12, 1
        %s194 = sand.u32 %s17, 1
        %s195 = sand.u32 %s17, 1
        %s196 = smul.addr %s195, 16
        %s197 = scalar_lea.vmem [#allocation0], %s196
        %s198 = sand.u32 %s17, 1
        %s199 = sand.u32 %s17, 1
        %s200 = smul.addr %s199, 16
        %s201 = scalar_lea.vmem [#allocation1], %s200
        %s202 = sand.u32 %s17, 1
        %s203 = sand.u32 %s17, 1
        %s204 = smul.addr %s203, 16
        %s205 = scalar_lea.vmem [#allocation2], %s204
        %s206 = sand.u32 %s17, 1
        %s207 = sand.u32 %s17, 1
        %s208 = smul.addr %s207, 16
        %s209 = scalar_lea.vmem [#allocation3], %s208
        %s210 = sand.u32 %s17, 1
        %s211 = sand.u32 %s17, 1
        %s212 = smul.addr %s211, 16
        %s213 = scalar_lea.vmem [#allocation0], %s212
        %s214 = sand.u32 %s17, 1
        %s215 = sand.u32 %s17, 1
        %s216 = smul.addr %s215, 16
        %s217 = scalar_lea.vmem [#allocation1], %s216
        %s218 = sand.u32 %s17, 1
        %s219 = sand.u32 %s17, 1
        %s220 = smul.addr %s219, 16
        %s221 = scalar_lea.vmem [#allocation2], %s220
        %s222 = sand.u32 %s17, 1
        %s223 = sand.u32 %s17, 1
        %s224 = smul.addr %s223, 16
        %s225 = scalar_lea.vmem [#allocation3], %s224
        %p226 = pneg %p40
        %p227 = pneg %p37
        %s228 = sand.u32 %s27, 1
        %s229 = sand.u32 %s27, 1
        %s230 = smul.addr %s229, 4
        %s231 = scalar_lea.vmem [#allocation5], %s230
        %p232 = pneg %p68
        %p233 = pneg %p65
        %s234 = sand.u32 %s55, 1
        %s235 = sand.u32 %s55, 1
        %s236 = smul.addr %s235, 4
        %s237 = scalar_lea.vmem [#allocation7], %s236
        %s238 = sand.u32 %s17, 1
        %s239 = sand.u32 %s17, 1
        %s240 = smul.addr %s239, 16
        %s241 = scalar_lea.vmem [#allocation8], %s240
        %s242 = sand.u32 %s17, 1
        %s243 = sand.u32 %s17, 1
        %s244 = smul.addr %s243, 16
        %s245 = scalar_lea.vmem [#allocation9], %s244
        %s246 = sand.u32 %s17, 1
        %s247 = sand.u32 %s17, 1
        %s248 = smul.addr %s247, 16
        %s249 = scalar_lea.vmem [#allocation10], %s248
        %s250 = sand.u32 %s17, 1
        %s251 = sand.u32 %s17, 1
        %s252 = smul.addr %s251, 16
        %s253 = scalar_lea.vmem [#allocation11], %s252
        %s254 = sshrl.u32 %s17, 3
        %s255 = sshrl.u32 %s17, 3
        %s256 = smov [#allocation12]
        %v257 = vld [vmem:[%s197] sm:$0xff]
        %258 = vst [vmem:[%s256] sm:$0xff] %v257
        %s259 = scalar_lea.vmem %s256, 8
        %s260 = scalar_lea.vmem %s197, 8 [#allocation0]
        %v261 = vld [vmem:[%s260] sm:$0xff]
        %262 = vst [vmem:[%s259] sm:$0xff] %v261
        %s263 = smov [#allocation13]
        %v264 = vld [vmem:[%s201] sm:$0xff]
        %265 = vst [vmem:[%s263] sm:$0xff] %v264
        %s266 = scalar_lea.vmem %s263, 8
        %s267 = scalar_lea.vmem %s201, 8 [#allocation1]
        %v268 = vld [vmem:[%s267] sm:$0xff]
        %269 = vst [vmem:[%s266] sm:$0xff] %v268
        %s270 = smov [#allocation14]
        %v271 = vld [vmem:[%s205] sm:$0xff]
        %272 = vst [vmem:[%s270] sm:$0xff] %v271
        %s273 = scalar_lea.vmem %s270, 8
        %s274 = scalar_lea.vmem %s205, 8 [#allocation2]
        %v275 = vld [vmem:[%s274] sm:$0xff]
        %276 = vst [vmem:[%s273] sm:$0xff] %v275
        %s277 = smov [#allocation15]
        %v278 = vld [vmem:[%s209] sm:$0xff]
        %279 = vst [vmem:[%s277] sm:$0xff] %v278
        %s280 = scalar_lea.vmem %s277, 8
        %s281 = scalar_lea.vmem %s209, 8 [#allocation3]
        %v282 = vld [vmem:[%s281] sm:$0xff]
        %283 = vst [vmem:[%s280] sm:$0xff] %v282
        %284 = vst [vmem:[%s241] sm:$0xff] 0.0
        %s285 = scalar_lea.vmem %s241, 8 [#allocation8]
        %286 = vst [vmem:[%s285] sm:$0xff] 0.0
        %287 = vst [vmem:[%s245] sm:$0xff] 0.0
        %s288 = scalar_lea.vmem %s245, 8 [#allocation9]
        %289 = vst [vmem:[%s288] sm:$0xff] 0.0
        %290 = vst [vmem:[%s249] sm:$0xff] 0.0
        %s291 = scalar_lea.vmem %s249, 8 [#allocation10]
        %292 = vst [vmem:[%s291] sm:$0xff] 0.0
        %293 = vst [vmem:[%s253] sm:$0xff] 0.0
        %s294 = scalar_lea.vmem %s253, 8 [#allocation11]
        %295 = vst [vmem:[%s294] sm:$0xff] 0.0
        %s296 = smov %s241
        %v297 = vlaneseq
        %v298 = vand.u32 %v297, 127
        %v299 = vmov %v298
        %v300 = vlaneseq
        %v301 = vshrl.u32 %v300, 7
        %v302 = vmov %v301
        %v303 = vld [vmem:[%s296] sm:$0xff]
        %vm306 = vcmp.eq.s32.totalorder %v302, %v299
        %v307 = vsel %vm306, 1.0, %v303
        %308 = vst [vmem:[%s296] sm:$0xff] %v307
        %s309 = scalar_lea.vmem %s296, 8
        %v310 = vld [vmem:[%s309] sm:$0xff]
        %v312 = vadd.s32 %v302, 8
        %vm313 = vcmp.eq.s32.totalorder %v312, %v299
        %v314 = vsel %vm313, 1.0, %v310
        %315 = vst [vmem:[%s309] sm:$0xff] %v314
        %s316 = smov %s253
        %v317 = vlaneseq
        %v318 = vand.u32 %v317, 127
        %v319 = vmov %v318
        %v320 = vlaneseq
        %v321 = vshrl.u32 %v320, 7
        %v322 = vmov %v321
        %v323 = vld [vmem:[%s316] sm:$0xff]
        %vm326 = vcmp.eq.s32.totalorder %v322, %v319
        %v327 = vsel %vm326, 1.0, %v323
        %328 = vst [vmem:[%s316] sm:$0xff] %v327
        %s329 = scalar_lea.vmem %s316, 8
        %v330 = vld [vmem:[%s329] sm:$0xff]
        %v332 = vadd.s32 %v322, 8
        %vm333 = vcmp.eq.s32.totalorder %v332, %v319
        %v334 = vsel %vm333, 1.0, %v330
        %335 = vst [vmem:[%s329] sm:$0xff] %v334
        // While loop
        $region97: #{custom-call.2} parent=95 // loop_pre_header
          _
        $region98: #{custom-call.2} parent=95 // loop_header
          %s337 = sphi 0, %s1235
          %v338 = vlaneseq
          %v339 = vand.u32 %v338, 127
          %v340 = vmov %v339
          %v341 = vlaneseq
          %v342 = vshrl.u32 %v341, 7
          %v343 = vmov %v342
          %s344 = smov [#allocation12]
          %v345 = vlaneseq
          %v346 = vand.u32 %v345, 127
          %vm347 = vcmp.ge.s32.totalorder %v346, 0
          %vm348 = vcmp.lt.s32.totalorder %v346, 16
          %vm349 = vmand %vm347, %vm348
          %v350 = vld [vmem:[%s344] sm:$0xff]
          %v351 = vsel %vm349, %v350, 0.0
          %v352 = vmul.f32 %v351, %v351
          %vm355 = vcmp.eq.s32.totalorder %v343, %v340
          %v356 = vsel %vm355, 0.0, %v352
          %s357 = scalar_lea.vmem %s344, 8
          %v358 = vld [vmem:[%s357] sm:$0xff]
          %v359 = vsel %vm349, %v358, 0.0
          %v360 = vmul.f32 %v359, %v359
          %v362 = vadd.s32 %v343, 8
          %vm363 = vcmp.eq.s32.totalorder %v362, %v340
          %v364 = vsel %vm363, 0.0, %v360
          %v365 = vadd.f32 %v356, %v364
          %v366 = vadd.f32 %v352, %v360
          %v367 = vlaneseq
          %v368 = vand.u32 %v367, 127
          %v369 = vmov %v368
          %v370 = vlaneseq
          %v371 = vshrl.u32 %v370, 7
          %v372 = vmov %v371
          %s373 = smov [#allocation13]
          %v374 = vlaneseq
          %v375 = vand.u32 %v374, 127
          %vm376 = vcmp.ge.s32.totalorder %v375, 0
          %vm377 = vcmp.lt.s32.totalorder %v375, 16
          %vm378 = vmand %vm376, %vm377
          %v379 = vld [vmem:[%s373] sm:$0xff]
          %v380 = vsel %vm378, %v379, 0.0
          %v381 = vmul.f32 %v380, %v380
          %v382 = vadd.f32 %v365, %v381
          %v383 = vadd.f32 %v366, %v381
          %s384 = scalar_lea.vmem %s373, 8
          %v385 = vld [vmem:[%s384] sm:$0xff]
          %v386 = vsel %vm378, %v385, 0.0
          %v387 = vmul.f32 %v386, %v386
          %v388 = vadd.f32 %v382, %v387
          %v389 = vadd.f32 %v383, %v387
          %v390 = vlaneseq
          %v391 = vand.u32 %v390, 127
          %v392 = vmov %v391
          %v393 = vlaneseq
          %v394 = vshrl.u32 %v393, 7
          %v395 = vmov %v394
          %s396 = smov [#allocation14]
          %v397 = vlaneseq
          %v398 = vand.u32 %v397, 127
          %vm399 = vcmp.ge.s32.totalorder %v398, 0
          %vm400 = vcmp.lt.s32.totalorder %v398, 16
          %vm401 = vmand %vm399, %vm400
          %v402 = vld [vmem:[%s396] sm:$0xff]
          %v403 = vsel %vm401, %v402, 0.0
          %v404 = vmul.f32 %v403, %v403
          %v405 = vadd.f32 %v388, %v404
          %v406 = vadd.f32 %v389, %v404
          %s407 = scalar_lea.vmem %s396, 8
          %v408 = vld [vmem:[%s407] sm:$0xff]
          %v409 = vsel %vm401, %v408, 0.0
          %v410 = vmul.f32 %v409, %v409
          %v411 = vadd.f32 %v405, %v410
          %v412 = vadd.f32 %v406, %v410
          %v413 = vlaneseq
          %v414 = vand.u32 %v413, 127
          %v415 = vmov %v414
          %v416 = vlaneseq
          %v417 = vshrl.u32 %v416, 7
          %v418 = vmov %v417
          %s419 = smov [#allocation15]
          %v420 = vlaneseq
          %v421 = vand.u32 %v420, 127
          %vm422 = vcmp.ge.s32.totalorder %v421, 0
          %vm423 = vcmp.lt.s32.totalorder %v421, 16
          %vm424 = vmand %vm422, %vm423
          %v425 = vld [vmem:[%s419] sm:$0xff]
          %v426 = vsel %vm424, %v425, 0.0
          %v427 = vmul.f32 %v426, %v426
          %vm430 = vcmp.eq.s32.totalorder %v418, %v415
          %v431 = vsel %vm430, 0.0, %v427
          %v432 = vadd.f32 %v411, %v431
          %v433 = vadd.f32 %v412, %v427
          %s434 = scalar_lea.vmem %s419, 8
          %v435 = vld [vmem:[%s434] sm:$0xff]
          %v436 = vsel %vm424, %v435, 0.0
          %v437 = vmul.f32 %v436, %v436
          %v439 = vadd.s32 %v418, 8
          %vm440 = vcmp.eq.s32.totalorder %v439, %v415
          %v441 = vsel %vm440, 0.0, %v437
          %v442 = vadd.f32 %v432, %v441
          %v443 = vadd.f32 %v433, %v437
          %444 = vadd.xlane.f32.xlu0 %v443
          %v445 = vpop.xlane.xlu0 %444
          %v446 = vrot.slane %v445, 4
          %v447 = vadd.f32 %v445, %v446
          %v448 = vrot.slane %v447, 2
          %v449 = vadd.f32 %v447, %v448
          %v450 = vrot.slane %v449, 1
          %v451 = vadd.f32 %v449, %v450
          %452 = vadd.xlane.f32.xlu0 %v442
          %v453 = vpop.xlane.xlu0 %452
          %v454 = vrot.slane %v453, 4
          %v455 = vadd.f32 %v453, %v454
          %v456 = vrot.slane %v455, 2
          %v457 = vadd.f32 %v455, %v456
          %v458 = vrot.slane %v457, 1
          %v459 = vadd.f32 %v457, %v458
          %s460 = vtos %v459
          %s461 = vtos %v451
          %s462 = smul.f32 1e-10, %s461
          %p463 = scmp.le.f32.partialorder %s460, %s462
          %p464 = scmp.ge.s32.totalorder %s337, 15
          %p465 = por %p463, %p464
        $region99: #{custom-call.2} parent=95 // loop_header_branch
          %1237 = sbr.rel (%p465) target = $region103
        $region100: #{custom-call.2} parent=95 // loop_body
          loop: start=0, step=1, limit=31
          $region104: #{custom-call.2} parent=100 // loop_pre_header
            _
          $region105: #{custom-call.2} parent=100 // loop_header
            %s467 = sphi 0, %s471
            %p468 = scmp.ge.s32.totalorder %s467, 31
          $region106: #{custom-call.2} parent=100 // loop_header_branch
            %470 = sbr.rel (%p468) target = $region110
          $region107: #{custom-call.2} parent=100 // loop_body
            #allocation16 [shape = 'f32[1024]{0}', space=vmem, size = 0x1000, scoped, tag = 'a_tl_diag vmem']
            #allocation17 [shape = 'f32[1024]{0}', space=vmem, size = 0x1000, scoped, tag = 'a_tr_diag vmem']
            #allocation18 [shape = 'f32[1024]{0}', space=vmem, size = 0x1000, scoped, tag = 'a_br_diag vmem']
            #allocation19 [shape = 'f32[1024]{0}', space=vmem, size = 0x1000, scoped, tag = 'rt1 vmem']
            #allocation20 [shape = 'f32[1024]{0}', space=vmem, size = 0x1000, scoped, tag = 'rt2 vmem']
            #allocation21 [shape = 'f32[1024]{0}', space=vmem, size = 0x1000, scoped, tag = 'c vmem']
            #allocation22 [shape = 'f32[1024]{0}', space=vmem, size = 0x1000, scoped, tag = 's vmem']
            #allocation23 [shape = 'f32[8192]{0}', space=vmem, size = 0x8000, scoped, tag = 'c broadcast']
            #allocation24 [shape = 'f32[8192]{0}', space=vmem, size = 0x8000, scoped, tag = 's broadcast']
            %s472 = smov [#allocation12]
            %s473 = smov [#allocation16]
            %v474 = vlaneseq
            %v475 = vand.u32 %v474, 127
            %v476 = vmov %v475
            %v477 = vlaneseq
            %v478 = vshrl.u32 %v477, 7
            %v479 = vmov %v478
            %v480 = vld [vmem:[%s472] sm:$0xff]
            %vm483 = vcmp.eq.s32.totalorder %v479, %v476
            %v484 = vsel %vm483, %v480, 0.0
            %s485 = scalar_lea.vmem %s472, 8
            %v486 = vld [vmem:[%s485] sm:$0xff]
            %v488 = vadd.s32 %v479, 8
            %vm489 = vcmp.eq.s32.totalorder %v488, %v476
            %v490 = vsel %vm489, %v486, %v484
            %v491 = vrot.slane %v490, 4
            %v492 = vadd.f32 %v490, %v491
            %v493 = vrot.slane %v492, 2
            %v494 = vadd.f32 %v492, %v493
            %v495 = vrot.slane %v494, 1
            %v496 = vadd.f32 %v494, %v495
            %497 = vst [vmem:[%s473] sm:$0x1] %v496
            %s498 = smov [#allocation13]
            %s499 = smov [#allocation17]
            %v500 = vlaneseq
            %v501 = vand.u32 %v500, 127
            %v502 = vmov %v501
            %v503 = vlaneseq
            %v504 = vshrl.u32 %v503, 7
            %v505 = vmov %v504
            %v506 = vld [vmem:[%s498] sm:$0xff]
            %vm509 = vcmp.eq.s32.totalorder %v505, %v502
            %v510 = vsel %vm509, %v506, 0.0
            %s511 = scalar_lea.vmem %s498, 8
            %v512 = vld [vmem:[%s511] sm:$0xff]
            %v514 = vadd.s32 %v505, 8
            %vm515 = vcmp.eq.s32.totalorder %v514, %v502
            %v516 = vsel %vm515, %v512, %v510
            %v517 = vrot.slane %v516, 4
            %v518 = vadd.f32 %v516, %v517
            %v519 = vrot.slane %v518, 2
            %v520 = vadd.f32 %v518, %v519
            %v521 = vrot.slane %v520, 1
            %v522 = vadd.f32 %v520, %v521
            %523 = vst [vmem:[%s499] sm:$0x1] %v522
            %s524 = smov [#allocation15]
            %s525 = smov [#allocation18]
            %v526 = vlaneseq
            %v527 = vand.u32 %v526, 127
            %v528 = vmov %v527
            %v529 = vlaneseq
            %v530 = vshrl.u32 %v529, 7
            %v531 = vmov %v530
            %v532 = vld [vmem:[%s524] sm:$0xff]
            %vm535 = vcmp.eq.s32.totalorder %v531, %v528
            %v536 = vsel %vm535, %v532, 0.0
            %s537 = scalar_lea.vmem %s524, 8
            %v538 = vld [vmem:[%s537] sm:$0xff]
            %v540 = vadd.s32 %v531, 8
            %vm541 = vcmp.eq.s32.totalorder %v540, %v528
            %v542 = vsel %vm541, %v538, %v536
            %v543 = vrot.slane %v542, 4
            %v544 = vadd.f32 %v542, %v543
            %v545 = vrot.slane %v544, 2
            %v546 = vadd.f32 %v544, %v545
            %v547 = vrot.slane %v546, 1
            %v548 = vadd.f32 %v546, %v547
            %549 = vst [vmem:[%s525] sm:$0x1] %v548
            %s550 = smov [#allocation21]
            %s551 = smov [#allocation22]
            %s552 = smov [#allocation16]
            %v553 = vld [vmem:[%s552] sm:$0xff]
            %s554 = smov [#allocation17]
            %v555 = vld [vmem:[%s554] sm:$0xff]
            %s556 = smov [#allocation18]
            %v557 = vld [vmem:[%s556] sm:$0xff]
            %v558 = vsub.f32 %v557, %v553
            %v559 = vmul.f32 2.0, %v555
            %v560 = vrcp.pop %v559
            %v561 = vmul.f32 %v558, %v560
            %vm562 = vcmp.ge.f32.partialorder %v561, 0.0
            %v563 = vmul.f32 %v561, %v561
            %v564 = vadd.f32 1.0, %v563
            %v565 = vrsqrt.pop %v564
            %v566 = vmul.f32 %v564, %v565
            %vm567 = vcmp.eq.f32.partialorder %v564, inf
            %v568 = vsel %vm567, %v564, %v566
            %vm569 = vcmp.eq.f32.partialorder %v564, 0.0
            %v570 = vand.u32 %v564, 2147483648
            %v571 = vsel %vm569, %v570, %v568
            %v572 = vxor.u32 %v571, 2147483648
            %v573 = vsel %vm562, %v571, %v572
            %v574 = vadd.f32 %v561, %v573
            %v575 = vrcp.pop %v574
            %v576 = vand.u32 2147483647, %v553
            %v577 = vand.u32 2147483647, %v555
            %v578 = vand.u32 2147483647, %v557
            %v579 = vmin.f32 %v576, %v578
            %v580 = vmul.f32 1.1920929e-08, %v579
            %vm581 = vcmp.le.f32.partialorder %v577, %v580
            %v582 = vsel %vm581, 0.0, %v575
            %v583 = vmul.f32 %v582, %v582
            %v584 = vadd.f32 1.0, %v583
            %v585 = vrsqrt.pop %v584
            %v586 = vmul.f32 %v582, %v585
            %v587 = vmul.f32 %v582, %v555
            %v588 = vsub.f32 %v553, %v587
            %v589 = vmul.f32 %v582, %v555
            %v590 = vadd.f32 %v557, %v589
            %s591 = smov [#allocation19]
            %592 = vst [vmem:[%s591] sm:$0xff] %v588
            %s593 = smov [#allocation20]
            %594 = vst [vmem:[%s593] sm:$0xff] %v590
            %s595 = smov %s550
            %596 = vst [vmem:[%s595] sm:$0xff] %v585
            %s597 = smov %s551
            %598 = vst [vmem:[%s597] sm:$0xff] %v586
            %s599 = smov [#allocation21]
            %v600 = vld [vmem:[%s599] ss:$0 sm:$0xff]
            %v601 = vlaneseq
            %v602 = vand.u32 %v601, 127
            %v603 = vmov %v602
            %v604 = vlaneseq
            %v605 = vshrl.u32 %v604, 7
            %v606 = vmov %v605
            %vm608 = vcmp.eq.s32.totalorder %v606, %v603
            %v609 = vsel %vm608, %v600, 0.0
            %610 = vadd.xlane.f32.xlu0 %v609
            %v611 = vpop.xlane.xlu0 %610
            %s612 = smov [#allocation23]
            %613 = vst [vmem:[%s612] sm:$0xff] %v611
            %s614 = smov [#allocation21]
            %v615 = vld [vmem:[%s614] ss:$0 sm:$0xff]
            %v616 = vlaneseq
            %v617 = vand.u32 %v616, 127
            %v618 = vmov %v617
            %v619 = vlaneseq
            %v620 = vshrl.u32 %v619, 7
            %v621 = vmov %v620
            %v622 = vadd.s32 %v621, 8
            %vm623 = vcmp.eq.s32.totalorder %v622, %v618
            %v624 = vsel %vm623, %v615, 0.0
            %625 = vadd.xlane.f32.xlu0 %v624
            %v626 = vpop.xlane.xlu0 %625
            %s627 = smov [#allocation23]
            %s628 = scalar_lea.vmem %s627, 8
            %629 = vst [vmem:[%s628] sm:$0xff] %v626
            %s630 = smov [#allocation22]
            %v631 = vld [vmem:[%s630] ss:$0 sm:$0xff]
            %v632 = vlaneseq
            %v633 = vand.u32 %v632, 127
            %v634 = vmov %v633
            %v635 = vlaneseq
            %v636 = vshrl.u32 %v635, 7
            %v637 = vmov %v636
            %vm639 = vcmp.eq.s32.totalorder %v637, %v634
            %v640 = vsel %vm639, %v631, 0.0
            %641 = vadd.xlane.f32.xlu0 %v640
            %v642 = vpop.xlane.xlu0 %641
            %s643 = smov [#allocation24]
            %644 = vst [vmem:[%s643] sm:$0xff] %v642
            %s645 = smov [#allocation22]
            %v646 = vld [vmem:[%s645] ss:$0 sm:$0xff]
            %v647 = vlaneseq
            %v648 = vand.u32 %v647, 127
            %v649 = vmov %v648
            %v650 = vlaneseq
            %v651 = vshrl.u32 %v650, 7
            %v652 = vmov %v651
            %v653 = vadd.s32 %v652, 8
            %vm654 = vcmp.eq.s32.totalorder %v653, %v649
            %v655 = vsel %vm654, %v646, 0.0
            %656 = vadd.xlane.f32.xlu0 %v655
            %v657 = vpop.xlane.xlu0 %656
            %s658 = smov [#allocation24]
            %s659 = scalar_lea.vmem %s658, 8
            %660 = vst [vmem:[%s659] sm:$0xff] %v657
            %s661 = smov [#allocation23]
            %v662 = vld [vmem:[%s661] sm:$0xff]
            %s663 = smov [#allocation24]
            %v664 = vld [vmem:[%s663] sm:$0xff]
            %s665 = smov [#allocation12]
            %s666 = smov [#allocation13]
            %s667 = smov [#allocation14]
            %s668 = smov [#allocation15]
            %v669 = vld [vmem:[%s665] sm:$0xff]
            %v670 = vld [vmem:[%s666] sm:$0xff]
            %v671 = vld [vmem:[%s667] sm:$0xff]
            %v672 = vld [vmem:[%s668] sm:$0xff]
            %v673 = vmul.f32 %v662, %v669
            %v674 = vmul.f32 %v664, %v671
            %v675 = vsub.f32 %v673, %v674
            %v676 = vmul.f32 %v662, %v670
            %v677 = vmul.f32 %v664, %v672
            %v678 = vsub.f32 %v676, %v677
            %v679 = vmul.f32 %v664, %v669
            %v680 = vmul.f32 %v662, %v671
            %v681 = vadd.f32 %v679, %v680
            %v682 = vmul.f32 %v664, %v670
            %v683 = vmul.f32 %v662, %v672
            %v684 = vadd.f32 %v682, %v683
            %685 = vst [vmem:[%s665] sm:$0xff] %v675
            %686 = vst [vmem:[%s666] sm:$0xff] %v678
            %687 = vst [vmem:[%s667] sm:$0xff] %v681
            %688 = vst [vmem:[%s668] sm:$0xff] %v684
            %s689 = smov [#allocation23]
            %s690 = scalar_lea.vmem %s689, 8
            %v691 = vld [vmem:[%s690] sm:$0xff]
            %s692 = smov [#allocation24]
            %s693 = scalar_lea.vmem %s692, 8
            %v694 = vld [vmem:[%s693] sm:$0xff]
            %s695 = smov [#allocation12]
            %s696 = scalar_lea.vmem %s695, 8
            %s697 = smov [#allocation13]
            %s698 = scalar_lea.vmem %s697, 8
            %s699 = smov [#allocation14]
            %s700 = scalar_lea.vmem %s699, 8
            %s701 = smov [#allocation15]
            %s702 = scalar_lea.vmem %s701, 8
            %v703 = vld [vmem:[%s696] sm:$0xff]
            %v704 = vld [vmem:[%s698] sm:$0xff]
            %v705 = vld [vmem:[%s700] sm:$0xff]
            %v706 = vld [vmem:[%s702] sm:$0xff]
            %v707 = vmul.f32 %v691, %v703
            %v708 = vmul.f32 %v694, %v705
            %v709 = vsub.f32 %v707, %v708
            %v710 = vmul.f32 %v691, %v704
            %v711 = vmul.f32 %v694, %v706
            %v712 = vsub.f32 %v710, %v711
            %v713 = vmul.f32 %v694, %v703
            %v714 = vmul.f32 %v691, %v705
            %v715 = vadd.f32 %v713, %v714
            %v716 = vmul.f32 %v694, %v704
            %v717 = vmul.f32 %v691, %v706
            %v718 = vadd.f32 %v716, %v717
            %719 = vst [vmem:[%s696] sm:$0xff] %v709
            %720 = vst [vmem:[%s698] sm:$0xff] %v712
            %721 = vst [vmem:[%s700] sm:$0xff] %v715
            %722 = vst [vmem:[%s702] sm:$0xff] %v718
            %s723 = smov [#allocation21]
            %v724 = vld [vmem:[%s723] ss:$0 sm:$0xff]
            %s725 = smov [#allocation22]
            %v726 = vld [vmem:[%s725] ss:$0 sm:$0xff]
            %s727 = smov [#allocation12]
            %s728 = smov [#allocation13]
            %s729 = smov [#allocation14]
            %s730 = smov [#allocation15]
            %v731 = vld [vmem:[%s727] sm:$0xff]
            %v732 = vld [vmem:[%s728] sm:$0xff]
            %v733 = vld [vmem:[%s729] sm:$0xff]
            %v734 = vld [vmem:[%s730] sm:$0xff]
            %v735 = vmul.f32 %v724, %v731
            %v736 = vmul.f32 %v726, %v732
            %v737 = vsub.f32 %v735, %v736
            %v738 = vmul.f32 %v726, %v731
            %v739 = vmul.f32 %v724, %v732
            %v740 = vadd.f32 %v738, %v739
            %v741 = vmul.f32 %v724, %v733
            %v742 = vmul.f32 %v726, %v734
            %v743 = vsub.f32 %v741, %v742
            %v744 = vmul.f32 %v726, %v733
            %v745 = vmul.f32 %v724, %v734
            %v746 = vadd.f32 %v744, %v745
            %747 = vst [vmem:[%s727] sm:$0xff] %v737
            %748 = vst [vmem:[%s728] sm:$0xff] %v740
            %749 = vst [vmem:[%s729] sm:$0xff] %v743
            %750 = vst [vmem:[%s730] sm:$0xff] %v746
            %s751 = smov [#allocation12]
            %s752 = scalar_lea.vmem %s751, 8
            %s753 = smov [#allocation13]
            %s754 = scalar_lea.vmem %s753, 8
            %s755 = smov [#allocation14]
            %s756 = scalar_lea.vmem %s755, 8
            %s757 = smov [#allocation15]
            %s758 = scalar_lea.vmem %s757, 8
            %v759 = vld [vmem:[%s752] sm:$0xff]
            %v760 = vld [vmem:[%s754] sm:$0xff]
            %v761 = vld [vmem:[%s756] sm:$0xff]
            %v762 = vld [vmem:[%s758] sm:$0xff]
            %v763 = vmul.f32 %v724, %v759
            %v764 = vmul.f32 %v726, %v760
            %v765 = vsub.f32 %v763, %v764
            %v766 = vmul.f32 %v726, %v759
            %v767 = vmul.f32 %v724, %v760
            %v768 = vadd.f32 %v766, %v767
            %v769 = vmul.f32 %v724, %v761
            %v770 = vmul.f32 %v726, %v762
            %v771 = vsub.f32 %v769, %v770
            %v772 = vmul.f32 %v726, %v761
            %v773 = vmul.f32 %v724, %v762
            %v774 = vadd.f32 %v772, %v773
            %775 = vst [vmem:[%s752] sm:$0xff] %v765
            %776 = vst [vmem:[%s754] sm:$0xff] %v768
            %777 = vst [vmem:[%s756] sm:$0xff] %v771
            %778 = vst [vmem:[%s758] sm:$0xff] %v774
            %s779 = smov [#allocation12]
            %s780 = smov [#allocation19]
            %v781 = vlaneseq
            %v782 = vand.u32 %v781, 127
            %v783 = vmov %v782
            %v784 = vlaneseq
            %v785 = vshrl.u32 %v784, 7
            %v786 = vmov %v785
            %v787 = vld [vmem:[%s780] ss:$0 sm:$0xff]
            %v788 = vld [vmem:[%s779] sm:$0xff]
            %vm791 = vcmp.eq.s32.totalorder %v786, %v783
            %v792 = vsel %vm791, %v787, %v788
            %793 = vst [vmem:[%s779] sm:$0xff] %v792
            %v794 = vld [vmem:[%s780] ss:$0 sm:$0xff]
            %s795 = scalar_lea.vmem %s779, 8
            %v796 = vld [vmem:[%s795] sm:$0xff]
            %v798 = vadd.s32 %v786, 8
            %vm799 = vcmp.eq.s32.totalorder %v798, %v783
            %v800 = vsel %vm799, %v794, %v796
            %801 = vst [vmem:[%s795] sm:$0xff] %v800
            %s802 = smov [#allocation13]
            %v803 = vlaneseq
            %v804 = vand.u32 %v803, 127
            %v805 = vmov %v804
            %v806 = vlaneseq
            %v807 = vshrl.u32 %v806, 7
            %v808 = vmov %v807
            %v809 = vld [vmem:[%s802] sm:$0xff]
            %vm812 = vcmp.eq.s32.totalorder %v808, %v805
            %v813 = vsel %vm812, 0.0, %v809
            %814 = vst [vmem:[%s802] sm:$0xff] %v813
            %s815 = scalar_lea.vmem %s802, 8
            %v816 = vld [vmem:[%s815] sm:$0xff]
            %v818 = vadd.s32 %v808, 8
            %vm819 = vcmp.eq.s32.totalorder %v818, %v805
            %v820 = vsel %vm819, 0.0, %v816
            %821 = vst [vmem:[%s815] sm:$0xff] %v820
            %s822 = smov [#allocation14]
            %v823 = vlaneseq
            %v824 = vand.u32 %v823, 127
            %v825 = vmov %v824
            %v826 = vlaneseq
            %v827 = vshrl.u32 %v826, 7
            %v828 = vmov %v827
            %v829 = vld [vmem:[%s822] sm:$0xff]
            %vm832 = vcmp.eq.s32.totalorder %v828, %v825
            %v833 = vsel %vm832, 0.0, %v829
            %834 = vst [vmem:[%s822] sm:$0xff] %v833
            %s835 = scalar_lea.vmem %s822, 8
            %v836 = vld [vmem:[%s835] sm:$0xff]
            %v838 = vadd.s32 %v828, 8
            %vm839 = vcmp.eq.s32.totalorder %v838, %v825
            %v840 = vsel %vm839, 0.0, %v836
            %841 = vst [vmem:[%s835] sm:$0xff] %v840
            %s842 = smov [#allocation15]
            %s843 = smov [#allocation20]
            %v844 = vlaneseq
            %v845 = vand.u32 %v844, 127
            %v846 = vmov %v845
            %v847 = vlaneseq
            %v848 = vshrl.u32 %v847, 7
            %v849 = vmov %v848
            %v850 = vld [vmem:[%s843] ss:$0 sm:$0xff]
            %v851 = vld [vmem:[%s842] sm:$0xff]
            %vm854 = vcmp.eq.s32.totalorder %v849, %v846
            %v855 = vsel %vm854, %v850, %v851
            %856 = vst [vmem:[%s842] sm:$0xff] %v855
            %v857 = vld [vmem:[%s843] ss:$0 sm:$0xff]
            %s858 = scalar_lea.vmem %s842, 8
            %v859 = vld [vmem:[%s858] sm:$0xff]
            %v861 = vadd.s32 %v849, 8
            %vm862 = vcmp.eq.s32.totalorder %v861, %v846
            %v863 = vsel %vm862, %v857, %v859
            %864 = vst [vmem:[%s858] sm:$0xff] %v863
            %s865 = smov [#allocation12]
            %s866 = smov [#allocation13]
            %v867 = vld [vmem:[%s866] sm:$0xff]
            %868 = vrot.lane.b32.xlu0 %v867, 1
            %v869 = vpop.permute.xlu0 %868
            %v870 = vld [vmem:[%s865] sm:$0xff]
            %v871 = vld [vmem:[%s865] sm:$0xff]
            %872 = vrot.lane.b32.xlu0 %v871, 1
            %v873 = vpop.permute.xlu0 %872
            %v874 = vlaneseq
            %v875 = vand.u32 %v874, 127
            %vm876 = vcmp.eq.s32.totalorder %v875, 0
            %v877 = vsel %vm876, %v871, %v873
            %v878 = vlaneseq
            %v879 = vand.u32 %v878, 127
            %vm880 = vcmp.eq.s32.totalorder %v879, 1
            %v881 = vsel %vm880, %v869, %v877
            %v882 = vlaneseq
            %v883 = vand.u32 %v882, 127
            %vm884 = vcmp.ge.s32.totalorder %v883, 0
            %vm885 = vcmp.lt.s32.totalorder %v883, 16
            %vm886 = vmand %vm884, %vm885
            %v887 = vsel %vm886, %v881, 0.0
            %v888 = vld [vmem:[%s866] sm:$0xff]
            %889 = vrot.lane.b32.xlu0 %v888, 127
            %v890 = vpop.permute.xlu0 %889
            %v891 = vlaneseq
            %v892 = vand.u32 %v891, 127
            %vm893 = vcmp.eq.s32.totalorder %v892, 15
            %v894 = vsel %vm893, %v870, %v890
            %s895 = smov [#allocation12]
            %s896 = scalar_lea.vmem %s895, 8
            %s897 = smov [#allocation13]
            %s898 = scalar_lea.vmem %s897, 8
            %v899 = vld [vmem:[%s898] sm:$0xff]
            %900 = vrot.lane.b32.xlu0 %v899, 1
            %v901 = vpop.permute.xlu0 %900
            %v902 = vld [vmem:[%s896] sm:$0xff]
            %v903 = vld [vmem:[%s896] sm:$0xff]
            %904 = vrot.lane.b32.xlu0 %v903, 1
            %v905 = vpop.permute.xlu0 %904
            %v906 = vlaneseq
            %v907 = vand.u32 %v906, 127
            %vm908 = vcmp.eq.s32.totalorder %v907, 0
            %v909 = vsel %vm908, %v903, %v905
            %v910 = vlaneseq
            %v911 = vand.u32 %v910, 127
            %vm912 = vcmp.eq.s32.totalorder %v911, 1
            %v913 = vsel %vm912, %v901, %v909
            %v914 = vlaneseq
            %v915 = vand.u32 %v914, 127
            %vm916 = vcmp.ge.s32.totalorder %v915, 0
            %vm917 = vcmp.lt.s32.totalorder %v915, 16
            %vm918 = vmand %vm916, %vm917
            %v919 = vsel %vm918, %v913, 0.0
            %v920 = vld [vmem:[%s898] sm:$0xff]
            %921 = vrot.lane.b32.xlu0 %v920, 127
            %v922 = vpop.permute.xlu0 %921
            %v923 = vlaneseq
            %v924 = vand.u32 %v923, 127
            %vm925 = vcmp.eq.s32.totalorder %v924, 15
            %v926 = vsel %vm925, %v902, %v922
            %927 = vst [vmem:[%s865] sm:$0xff] %v887
            %928 = vst [vmem:[%s866] sm:$0xff] %v894
            %929 = vst [vmem:[%s896] sm:$0xff] %v919
            %930 = vst [vmem:[%s898] sm:$0xff] %v926
            %s931 = smov [#allocation14]
            %s932 = smov [#allocation15]
            %v933 = vld [vmem:[%s932] sm:$0xff]
            %934 = vrot.lane.b32.xlu0 %v933, 1
            %v935 = vpop.permute.xlu0 %934
            %v936 = vld [vmem:[%s931] sm:$0xff]
            %v937 = vld [vmem:[%s931] sm:$0xff]
            %938 = vrot.lane.b32.xlu0 %v937, 1
            %v939 = vpop.permute.xlu0 %938
            %v940 = vlaneseq
            %v941 = vand.u32 %v940, 127
            %vm942 = vcmp.eq.s32.totalorder %v941, 0
            %v943 = vsel %vm942, %v937, %v939
            %v944 = vlaneseq
            %v945 = vand.u32 %v944, 127
            %vm946 = vcmp.eq.s32.totalorder %v945, 1
            %v947 = vsel %vm946, %v935, %v943
            %v948 = vlaneseq
            %v949 = vand.u32 %v948, 127
            %vm950 = vcmp.ge.s32.totalorder %v949, 0
            %vm951 = vcmp.lt.s32.totalorder %v949, 16
            %vm952 = vmand %vm950, %vm951
            %v953 = vsel %vm952, %v947, 0.0
            %v954 = vld [vmem:[%s932] sm:$0xff]
            %955 = vrot.lane.b32.xlu0 %v954, 127
            %v956 = vpop.permute.xlu0 %955
            %v957 = vlaneseq
            %v958 = vand.u32 %v957, 127
            %vm959 = vcmp.eq.s32.totalorder %v958, 15
            %v960 = vsel %vm959, %v936, %v956
            %s961 = smov [#allocation14]
            %s962 = scalar_lea.vmem %s961, 8
            %s963 = smov [#allocation15]
            %s964 = scalar_lea.vmem %s963, 8
            %v965 = vld [vmem:[%s964] sm:$0xff]
            %966 = vrot.lane.b32.xlu0 %v965, 1
            %v967 = vpop.permute.xlu0 %966
            %v968 = vld [vmem:[%s962] sm:$0xff]
            %v969 = vld [vmem:[%s962] sm:$0xff]
            %970 = vrot.lane.b32.xlu0 %v969, 1
            %v971 = vpop.permute.xlu0 %970
            %v972 = vlaneseq
            %v973 = vand.u32 %v972, 127
            %vm974 = vcmp.eq.s32.totalorder %v973, 0
            %v975 = vsel %vm974, %v969, %v971
            %v976 = vlaneseq
            %v977 = vand.u32 %v976, 127
            %vm978 = vcmp.eq.s32.totalorder %v977, 1
            %v979 = vsel %vm978, %v967, %v975
            %v980 = vlaneseq
            %v981 = vand.u32 %v980, 127
            %vm982 = vcmp.ge.s32.totalorder %v981, 0
            %vm983 = vcmp.lt.s32.totalorder %v981, 16
            %vm984 = vmand %vm982, %vm983
            %v985 = vsel %vm984, %v979, 0.0
            %v986 = vld [vmem:[%s964] sm:$0xff]
            %987 = vrot.lane.b32.xlu0 %v986, 127
            %v988 = vpop.permute.xlu0 %987
            %v989 = vlaneseq
            %v990 = vand.u32 %v989, 127
            %vm991 = vcmp.eq.s32.totalorder %v990, 15
            %v992 = vsel %vm991, %v968, %v988
            %993 = vst [vmem:[%s931] sm:$0xff] %v953
            %994 = vst [vmem:[%s932] sm:$0xff] %v960
            %995 = vst [vmem:[%s962] sm:$0xff] %v985
            %996 = vst [vmem:[%s964] sm:$0xff] %v992
            %s997 = smov [#allocation12]
            %s998 = smov [#allocation14]
            %v999 = vld [vmem:[%s997] ss:$0 sm:$0xff]
            %s1001 = scalar_lea.vmem %s997, 4294967295
            %v1002 = vld [vmem:[%s1001] sm:$0xfe]
            %v1003 = vlaneseq
            %v1004 = vshrl.u32 %v1003, 7
            %vm1005 = vcmp.eq.s32.totalorder %v1004, 0
            %v1006 = vsel %vm1005, %v999, %v1002
            %s1007 = scalar_lea.vmem %s997, 7
            %v1008 = vld [vmem:[%s1007] ss:$0 sm:$0xff]
            %1009 = vst [vmem:[%s997] sm:$0xff] %v1006
            %s1010 = scalar_lea.vmem %s997, 8
            %s1012 = scalar_lea.vmem %s1010, 4294967295
            %v1013 = vld [vmem:[%s1012] sm:$0xfe]
            %v1014 = vlaneseq
            %v1015 = vshrl.u32 %v1014, 7
            %vm1016 = vcmp.eq.s32.totalorder %v1015, 0
            %v1017 = vsel %vm1016, %v1008, %v1013
            %s1018 = scalar_lea.vmem %s1010, 7
            %v1019 = vld [vmem:[%s1018] ss:$0 sm:$0xff]
            %1020 = vst [vmem:[%s1010] sm:$0xff] %v1017
            %v1021 = vld [vmem:[%s998] ss:$0 sm:$0xff]
            %s1022 = scalar_lea.vmem %s997, 1
            %1023 = vst [vmem:[%s1022] sm:$0x1] %v1021
            %s1024 = scalar_lea.vmem %s998, 8
            %s1025 = scalar_lea.vmem %s1024, 1
            %v1026 = vld [vmem:[%s1025] sm:$0x7f]
            %v1027 = vlaneseq
            %v1028 = vshrl.u32 %v1027, 7
            %vm1029 = vcmp.eq.s32.totalorder %v1028, 7
            %v1030 = vsel %vm1029, %v1019, %v1026
            %v1031 = vld [vmem:[%s1024] ss:$0 sm:$0xff]
            %1032 = vst [vmem:[%s1024] sm:$0xff] %v1030
            %s1033 = scalar_lea.vmem %s998, 1
            %v1034 = vld [vmem:[%s1033] sm:$0x7f]
            %v1035 = vlaneseq
            %v1036 = vshrl.u32 %v1035, 7
            %vm1037 = vcmp.eq.s32.totalorder %v1036, 7
            %v1038 = vsel %vm1037, %v1031, %v1034
            %v1039 = vld [vmem:[%s998] ss:$0 sm:$0xff]
            %1040 = vst [vmem:[%s998] sm:$0xff] %v1038
            %s1041 = smov [#allocation13]
            %s1042 = smov [#allocation15]
            %v1043 = vld [vmem:[%s1041] ss:$0 sm:$0xff]
            %s1045 = scalar_lea.vmem %s1041, 4294967295
            %v1046 = vld [vmem:[%s1045] sm:$0xfe]
            %v1047 = vlaneseq
            %v1048 = vshrl.u32 %v1047, 7
            %vm1049 = vcmp.eq.s32.totalorder %v1048, 0
            %v1050 = vsel %vm1049, %v1043, %v1046
            %s1051 = scalar_lea.vmem %s1041, 7
            %v1052 = vld [vmem:[%s1051] ss:$0 sm:$0xff]
            %1053 = vst [vmem:[%s1041] sm:$0xff] %v1050
            %s1054 = scalar_lea.vmem %s1041, 8
            %s1056 = scalar_lea.vmem %s1054, 4294967295
            %v1057 = vld [vmem:[%s1056] sm:$0xfe]
            %v1058 = vlaneseq
            %v1059 = vshrl.u32 %v1058, 7
            %vm1060 = vcmp.eq.s32.totalorder %v1059, 0
            %v1061 = vsel %vm1060, %v1052, %v1057
            %s1062 = scalar_lea.vmem %s1054, 7
            %v1063 = vld [vmem:[%s1062] ss:$0 sm:$0xff]
            %1064 = vst [vmem:[%s1054] sm:$0xff] %v1061
            %v1065 = vld [vmem:[%s1042] ss:$0 sm:$0xff]
            %s1066 = scalar_lea.vmem %s1041, 1
            %1067 = vst [vmem:[%s1066] sm:$0x1] %v1065
            %s1068 = scalar_lea.vmem %s1042, 8
            %s1069 = scalar_lea.vmem %s1068, 1
            %v1070 = vld [vmem:[%s1069] sm:$0x7f]
            %v1071 = vlaneseq
            %v1072 = vshrl.u32 %v1071, 7
            %vm1073 = vcmp.eq.s32.totalorder %v1072, 7
            %v1074 = vsel %vm1073, %v1063, %v1070
            %v1075 = vld [vmem:[%s1068] ss:$0 sm:$0xff]
            %1076 = vst [vmem:[%s1068] sm:$0xff] %v1074
            %s1077 = scalar_lea.vmem %s1042, 1
            %v1078 = vld [vmem:[%s1077] sm:$0x7f]
            %v1079 = vlaneseq
            %v1080 = vshrl.u32 %v1079, 7
            %vm1081 = vcmp.eq.s32.totalorder %v1080, 7
            %v1082 = vsel %vm1081, %v1075, %v1078
            %v1083 = vld [vmem:[%s1042] ss:$0 sm:$0xff]
            %1084 = vst [vmem:[%s1042] sm:$0xff] %v1082
            %s1085 = smov [#allocation23]
            %v1086 = vld [vmem:[%s1085] sm:$0xff]
            %s1087 = smov [#allocation24]
            %v1088 = vld [vmem:[%s1087] sm:$0xff]
            %s1089 = smov %s241
            %s1090 = smov %s245
            %s1091 = smov %s249
            %s1092 = smov %s253
            %v1093 = vld [vmem:[%s1089] sm:$0xff]
            %v1094 = vld [vmem:[%s1090] sm:$0xff]
            %v1095 = vld [vmem:[%s1091] sm:$0xff]
            %v1096 = vld [vmem:[%s1092] sm:$0xff]
            %v1097 = vmul.f32 %v1086, %v1093
            %v1098 = vmul.f32 %v1088, %v1095
            %v1099 = vsub.f32 %v1097, %v1098
            %v1100 = vmul.f32 %v1086, %v1094
            %v1101 = vmul.f32 %v1088, %v1096
            %v1102 = vsub.f32 %v1100, %v1101
            %v1103 = vmul.f32 %v1088, %v1093
            %v1104 = vmul.f32 %v1086, %v1095
            %v1105 = vadd.f32 %v1103, %v1104
            %v1106 = vmul.f32 %v1088, %v1094
            %v1107 = vmul.f32 %v1086, %v1096
            %v1108 = vadd.f32 %v1106, %v1107
            %1109 = vst [vmem:[%s1089] sm:$0xff] %v1099
            %1110 = vst [vmem:[%s1090] sm:$0xff] %v1102
            %1111 = vst [vmem:[%s1091] sm:$0xff] %v1105
            %1112 = vst [vmem:[%s1092] sm:$0xff] %v1108
            %s1113 = smov [#allocation23]
            %s1114 = scalar_lea.vmem %s1113, 8
            %v1115 = vld [vmem:[%s1114] sm:$0xff]
            %s1116 = smov [#allocation24]
            %s1117 = scalar_lea.vmem %s1116, 8
            %v1118 = vld [vmem:[%s1117] sm:$0xff]
            %s1119 = smov %s241
            %s1120 = scalar_lea.vmem %s1119, 8
            %s1121 = smov %s245
            %s1122 = scalar_lea.vmem %s1121, 8
            %s1123 = smov %s249
            %s1124 = scalar_lea.vmem %s1123, 8
            %s1125 = smov %s253
            %s1126 = scalar_lea.vmem %s1125, 8
            %v1127 = vld [vmem:[%s1120] sm:$0xff]
            %v1128 = vld [vmem:[%s1122] sm:$0xff]
            %v1129 = vld [vmem:[%s1124] sm:$0xff]
            %v1130 = vld [vmem:[%s1126] sm:$0xff]
            %v1131 = vmul.f32 %v1115, %v1127
            %v1132 = vmul.f32 %v1118, %v1129
            %v1133 = vsub.f32 %v1131, %v1132
            %v1134 = vmul.f32 %v1115, %v1128
            %v1135 = vmul.f32 %v1118, %v1130
            %v1136 = vsub.f32 %v1134, %v1135
            %v1137 = vmul.f32 %v1118, %v1127
            %v1138 = vmul.f32 %v1115, %v1129
            %v1139 = vadd.f32 %v1137, %v1138
            %v1140 = vmul.f32 %v1118, %v1128
            %v1141 = vmul.f32 %v1115, %v1130
            %v1142 = vadd.f32 %v1140, %v1141
            %1143 = vst [vmem:[%s1120] sm:$0xff] %v1133
            %1144 = vst [vmem:[%s1122] sm:$0xff] %v1136
            %1145 = vst [vmem:[%s1124] sm:$0xff] %v1139
            %1146 = vst [vmem:[%s1126] sm:$0xff] %v1142
            %s1147 = smov %s241
            %s1148 = smov %s249
            %v1149 = vld [vmem:[%s1147] ss:$0 sm:$0xff]
            %s1151 = scalar_lea.vmem %s1147, 4294967295
            %v1152 = vld [vmem:[%s1151] sm:$0xfe]
            %v1153 = vlaneseq
            %v1154 = vshrl.u32 %v1153, 7
            %vm1155 = vcmp.eq.s32.totalorder %v1154, 0
            %v1156 = vsel %vm1155, %v1149, %v1152
            %s1157 = scalar_lea.vmem %s1147, 7
            %v1158 = vld [vmem:[%s1157] ss:$0 sm:$0xff]
            %1159 = vst [vmem:[%s1147] sm:$0xff] %v1156
            %s1160 = scalar_lea.vmem %s1147, 8
            %s1162 = scalar_lea.vmem %s1160, 4294967295
            %v1163 = vld [vmem:[%s1162] sm:$0xfe]
            %v1164 = vlaneseq
            %v1165 = vshrl.u32 %v1164, 7
            %vm1166 = vcmp.eq.s32.totalorder %v1165, 0
            %v1167 = vsel %vm1166, %v1158, %v1163
            %s1168 = scalar_lea.vmem %s1160, 7
            %v1169 = vld [vmem:[%s1168] ss:$0 sm:$0xff]
            %1170 = vst [vmem:[%s1160] sm:$0xff] %v1167
            %v1171 = vld [vmem:[%s1148] ss:$0 sm:$0xff]
            %s1172 = scalar_lea.vmem %s1147, 1
            %1173 = vst [vmem:[%s1172] sm:$0x1] %v1171
            %s1174 = scalar_lea.vmem %s1148, 8
            %s1175 = scalar_lea.vmem %s1174, 1
            %v1176 = vld [vmem:[%s1175] sm:$0x7f]
            %v1177 = vlaneseq
            %v1178 = vshrl.u32 %v1177, 7
            %vm1179 = vcmp.eq.s32.totalorder %v1178, 7
            %v1180 = vsel %vm1179, %v1169, %v1176
            %v1181 = vld [vmem:[%s1174] ss:$0 sm:$0xff]
            %1182 = vst [vmem:[%s1174] sm:$0xff] %v1180
            %s1183 = scalar_lea.vmem %s1148, 1
            %v1184 = vld [vmem:[%s1183] sm:$0x7f]
            %v1185 = vlaneseq
            %v1186 = vshrl.u32 %v1185, 7
            %vm1187 = vcmp.eq.s32.totalorder %v1186, 7
            %v1188 = vsel %vm1187, %v1181, %v1184
            %v1189 = vld [vmem:[%s1148] ss:$0 sm:$0xff]
            %1190 = vst [vmem:[%s1148] sm:$0xff] %v1188
            %s1191 = smov %s245
            %s1192 = smov %s253
            %v1193 = vld [vmem:[%s1191] ss:$0 sm:$0xff]
            %s1195 = scalar_lea.vmem %s1191, 4294967295
            %v1196 = vld [vmem:[%s1195] sm:$0xfe]
            %v1197 = vlaneseq
            %v1198 = vshrl.u32 %v1197, 7
            %vm1199 = vcmp.eq.s32.totalorder %v1198, 0
            %v1200 = vsel %vm1199, %v1193, %v1196
            %s1201 = scalar_lea.vmem %s1191, 7
            %v1202 = vld [vmem:[%s1201] ss:$0 sm:$0xff]
            %1203 = vst [vmem:[%s1191] sm:$0xff] %v1200
            %s1204 = scalar_lea.vmem %s1191, 8
            %s1206 = scalar_lea.vmem %s1204, 4294967295
            %v1207 = vld [vmem:[%s1206] sm:$0xfe]
            %v1208 = vlaneseq
            %v1209 = vshrl.u32 %v1208, 7
            %vm1210 = vcmp.eq.s32.totalorder %v1209, 0
            %v1211 = vsel %vm1210, %v1202, %v1207
            %s1212 = scalar_lea.vmem %s1204, 7
            %v1213 = vld [vmem:[%s1212] ss:$0 sm:$0xff]
            %1214 = vst [vmem:[%s1204] sm:$0xff] %v1211
            %v1215 = vld [vmem:[%s1192] ss:$0 sm:$0xff]
            %s1216 = scalar_lea.vmem %s1191, 1
            %1217 = vst [vmem:[%s1216] sm:$0x1] %v1215
            %s1218 = scalar_lea.vmem %s1192, 8
            %s1219 = scalar_lea.vmem %s1218, 1
            %v1220 = vld [vmem:[%s1219] sm:$0x7f]
            %v1221 = vlaneseq
            %v1222 = vshrl.u32 %v1221, 7
            %vm1223 = vcmp.eq.s32.totalorder %v1222, 7
            %v1224 = vsel %vm1223, %v1213, %v1220
            %v1225 = vld [vmem:[%s1218] ss:$0 sm:$0xff]
            %1226 = vst [vmem:[%s1218] sm:$0xff] %v1224
            %s1227 = scalar_lea.vmem %s1192, 1
            %v1228 = vld [vmem:[%s1227] sm:$0x7f]
            %v1229 = vlaneseq
            %v1230 = vshrl.u32 %v1229, 7
            %vm1231 = vcmp.eq.s32.totalorder %v1230, 7
            %v1232 = vsel %vm1231, %v1225, %v1228
            %v1233 = vld [vmem:[%s1192] ss:$0 sm:$0xff]
            %1234 = vst [vmem:[%s1192] sm:$0xff] %v1232
          $region108: #{custom-call.2} parent=100 // loop_footer
            %s471 = sadd.s32 1, %s467
          $region109: #{custom-call.2} parent=100 // loop_footer_branch
            %466 = sbr.rel target = $region105
          $region110: #{custom-call.2} parent=100 // loop_exit
            _
          %s1235 = sadd.s32 %s337, 1
        $region101: #{custom-call.2} parent=95 // loop_footer
          _
        $region102: #{custom-call.2} parent=95 // loop_footer_branch
          %336 = sbr.rel target = $region98
        $region103: #{custom-call.2} parent=95 // loop_exit
          _
        %s1238 = sand.u32 %s17, 7
        %s1239 = scalar_lea.vmem [#allocation4], %s1238
        %s1240 = sand.u32 %s17, 7
        %s1241 = scalar_lea.vmem [#allocation6], %s1240
        %s1242 = smov [#allocation12]
        %s1243 = smov %s1239
        %v1244 = vlaneseq
        %v1245 = vand.u32 %v1244, 127
        %v1246 = vmov %v1245
        %v1247 = vlaneseq
        %v1248 = vshrl.u32 %v1247, 7
        %v1249 = vmov %v1248
        %v1250 = vld [vmem:[%s1242] sm:$0xff]
        %vm1253 = vcmp.eq.s32.totalorder %v1249, %v1246
        %v1254 = vsel %vm1253, %v1250, 0.0
        %s1255 = scalar_lea.vmem %s1242, 8
        %v1256 = vld [vmem:[%s1255] sm:$0xff]
        %v1258 = vadd.s32 %v1249, 8
        %vm1259 = vcmp.eq.s32.totalorder %v1258, %v1246
        %v1260 = vsel %vm1259, %v1256, %v1254
        %v1261 = vrot.slane %v1260, 4
        %v1262 = vadd.f32 %v1260, %v1261
        %v1263 = vrot.slane %v1262, 2
        %v1264 = vadd.f32 %v1262, %v1263
        %v1265 = vrot.slane %v1264, 1
        %v1266 = vadd.f32 %v1264, %v1265
        %1267 = vst [vmem:[%s1243] sm:$0x1] %v1266
        %s1268 = smov [#allocation15]
        %s1269 = smov %s1241
        %v1270 = vlaneseq
        %v1271 = vand.u32 %v1270, 127
        %v1272 = vmov %v1271
        %v1273 = vlaneseq
        %v1274 = vshrl.u32 %v1273, 7
        %v1275 = vmov %v1274
        %v1276 = vld [vmem:[%s1268] sm:$0xff]
        %vm1279 = vcmp.eq.s32.totalorder %v1275, %v1272
        %v1280 = vsel %vm1279, %v1276, 0.0
        %s1281 = scalar_lea.vmem %s1268, 8
        %v1282 = vld [vmem:[%s1281] sm:$0xff]
        %v1284 = vadd.s32 %v1275, 8
        %vm1285 = vcmp.eq.s32.totalorder %v1284, %v1272
        %v1286 = vsel %vm1285, %v1282, %v1280
        %v1287 = vrot.slane %v1286, 4
        %v1288 = vadd.f32 %v1286, %v1287
        %v1289 = vrot.slane %v1288, 2
        %v1290 = vadd.f32 %v1288, %v1289
        %v1291 = vrot.slane %v1290, 1
        %v1292 = vadd.f32 %v1290, %v1291
        %1293 = vst [vmem:[%s1269] sm:$0x1] %v1292
        %s1295 = sshllo.u32 0, 4
        %v1297 = vld [vmem:[#allocation4] sm:%s1295]
        %s1298 = sshllo.u32 0, 4
        %1299 = vst [vmem:[%s231] sm:%s1298] %v1297
        %s1301 = sshllo.u32 0, 4
        %v1303 = vld [vmem:[#allocation6] sm:%s1301]
        %s1304 = sshllo.u32 0, 4
        %1305 = vst [vmem:[%s237] sm:%s1304] %v1303
        %s1306 = sand.u32 %s27, 1
        %s1307 = sand.u32 %s27, 1
        %s1308 = smul.addr %s1307, 4
        %s1309 = scalar_lea.vmem [#allocation5], %s1308
        %s1310 = sand.u32 %s55, 1
        %s1311 = sand.u32 %s55, 1
        %s1312 = smul.addr %s1311, 4
        %s1313 = scalar_lea.vmem [#allocation7], %s1312
        %s1314 = sand.u32 %s17, 1
        %s1315 = sand.u32 %s17, 1
        %s1316 = smul.addr %s1315, 16
        %s1317 = scalar_lea.vmem [#allocation8], %s1316
        %s1318 = sand.u32 %s17, 1
        %s1319 = sand.u32 %s17, 1
        %s1320 = smul.addr %s1319, 16
        %s1321 = scalar_lea.vmem [#allocation9], %s1320
        %s1322 = sand.u32 %s17, 1
        %s1323 = sand.u32 %s17, 1
        %s1324 = smul.addr %s1323, 16
        %s1325 = scalar_lea.vmem [#allocation10], %s1324
        %s1326 = sand.u32 %s17, 1
        %s1327 = sand.u32 %s17, 1
        %s1328 = smul.addr %s1327, 16
        %s1329 = scalar_lea.vmem [#allocation11], %s1328
        // Predicated region
        $region111: #{custom-call.2} parent=95 // pred_check
          %p1330 = pneg %p37
        $region112: #{custom-call.2} parent=95 // pred_check_branch
          %1332 = sbr.rel (%p1330) target = $region114
        $region113: #{custom-call.2} parent=95 // pred_region
          %s1333 = sshrl.u32 %s17, 3
          %s1334 = smul.addr %s1333, 4
          %s1335 = scalar_lea.vmem %s4, %s1334
          // Predicated region
          $region115: #{custom-call.2} parent=113 // pred_check
            _
          $region116: #{custom-call.2} parent=113 // pred_check_branch
            %1337 = sbr.rel (0) target = $region118
          $region117: #{custom-call.2} parent=113 // pred_region
            // Predicated region
            $region119: #{custom-call.2} parent=117 // pred_check
              _
            $region120: #{custom-call.2} parent=117 // pred_check_branch
              %1339 = sbr.rel target = $region122
            $region121: #{custom-call.2} parent=117 // pred_region
              // Predicated region
              $region134: #{custom-call.2} parent=121 // pred_check
                _
              $region135: #{custom-call.2} parent=121 // pred_check_branch
                %1354 = sbr.rel (0) target = $region137
              $region136: #{custom-call.2} parent=121 // pred_region
                loop: start=0, step=1, limit=1
                $region138: #{custom-call.2} parent=136 // loop_pre_header
                  _
                $region139: #{custom-call.2} parent=136 // loop_header
                  %s1357 = sphi 0, %s1361
                  %p1358 = scmp.ge.s32.totalorder %s1357, 1
                  %s1362 = sphi %s1309, %s1309
                  %s1363 = sphi %s1335, %s1335
                $region140: #{custom-call.2} parent=136 // loop_header_branch
                  %1360 = sbr.rel (%p1358) target = $region144
                $region141: #{custom-call.2} parent=136 // loop_body
                  %v1364 = vld [vmem:[%s1362] sm:$0xf]
                  %1365 = vst [vmem:[%s1363] sm:$0xf] %v1364
                $region142: #{custom-call.2} parent=136 // loop_footer
                  %s1361 = sadd.s32 1, %s1357
                $region143: #{custom-call.2} parent=136 // loop_footer_branch
                  %1356 = sbr.rel target = $region139
                $region144: #{custom-call.2} parent=136 // loop_exit
                  _
              $region137: #{custom-call.2} parent=121 // pred_fallthru
                _
            $region122: #{custom-call.2} parent=117 // pred_fallthru
              _
            // Predicated region
            $region123: #{custom-call.2} parent=117 // pred_check
              _
            $region124: #{custom-call.2} parent=117 // pred_check_branch
              %1341 = sbr.rel (0) target = $region126
            $region125: #{custom-call.2} parent=117 // pred_region
              loop: start=0, step=1, limit=1
              $region127: #{custom-call.2} parent=125 // loop_pre_header
                _
              $region128: #{custom-call.2} parent=125 // loop_header
                %s1344 = sphi 0, %s1348
                %p1345 = scmp.ge.s32.totalorder %s1344, 1
                %s1349 = sphi %s1309, %s1309
                %s1350 = sphi %s1335, %s1335
              $region129: #{custom-call.2} parent=125 // loop_header_branch
                %1347 = sbr.rel (%p1345) target = $region133
              $region130: #{custom-call.2} parent=125 // loop_body
                %v1351 = vld [vmem:[%s1349] sm:$0xf]
                %1352 = vst [vmem:[%s1350] sm:$0xf] %v1351
              $region131: #{custom-call.2} parent=125 // loop_footer
                %s1348 = sadd.s32 1, %s1344
              $region132: #{custom-call.2} parent=125 // loop_footer_branch
                %1343 = sbr.rel target = $region128
              $region133: #{custom-call.2} parent=125 // loop_exit
                _
            $region126: #{custom-call.2} parent=117 // pred_fallthru
              _
          $region118: #{custom-call.2} parent=113 // pred_fallthru
            _
          %1366 = vnop
        $region114: #{custom-call.2} parent=95 // pred_fallthru
          _
        // Predicated region
        $region145: #{custom-call.2} parent=95 // pred_check
          %p1367 = pneg %p65
        $region146: #{custom-call.2} parent=95 // pred_check_branch
          %1369 = sbr.rel (%p1367) target = $region148
        $region147: #{custom-call.2} parent=95 // pred_region
          %s1370 = sshrl.u32 %s17, 3
          %s1371 = smul.addr %s1370, 4
          %s1372 = scalar_lea.vmem %s5, %s1371
          // Predicated region
          $region149: #{custom-call.2} parent=147 // pred_check
            _
          $region150: #{custom-call.2} parent=147 // pred_check_branch
            %1374 = sbr.rel (0) target = $region152
          $region151: #{custom-call.2} parent=147 // pred_region
            // Predicated region
            $region153: #{custom-call.2} parent=151 // pred_check
              _
            $region154: #{custom-call.2} parent=151 // pred_check_branch
              %1376 = sbr.rel target = $region156
            $region155: #{custom-call.2} parent=151 // pred_region
              // Predicated region
              $region168: #{custom-call.2} parent=155 // pred_check
                _
              $region169: #{custom-call.2} parent=155 // pred_check_branch
                %1391 = sbr.rel (0) target = $region171
              $region170: #{custom-call.2} parent=155 // pred_region
                loop: start=0, step=1, limit=1
                $region172: #{custom-call.2} parent=170 // loop_pre_header
                  _
                $region173: #{custom-call.2} parent=170 // loop_header
                  %s1394 = sphi 0, %s1398
                  %p1395 = scmp.ge.s32.totalorder %s1394, 1
                  %s1399 = sphi %s1313, %s1313
                  %s1400 = sphi %s1372, %s1372
                $region174: #{custom-call.2} parent=170 // loop_header_branch
                  %1397 = sbr.rel (%p1395) target = $region178
                $region175: #{custom-call.2} parent=170 // loop_body
                  %v1401 = vld [vmem:[%s1399] sm:$0xf]
                  %1402 = vst [vmem:[%s1400] sm:$0xf] %v1401
                $region176: #{custom-call.2} parent=170 // loop_footer
                  %s1398 = sadd.s32 1, %s1394
                $region177: #{custom-call.2} parent=170 // loop_footer_branch
                  %1393 = sbr.rel target = $region173
                $region178: #{custom-call.2} parent=170 // loop_exit
                  _
              $region171: #{custom-call.2} parent=155 // pred_fallthru
                _
            $region156: #{custom-call.2} parent=151 // pred_fallthru
              _
            // Predicated region
            $region157: #{custom-call.2} parent=151 // pred_check
              _
            $region158: #{custom-call.2} parent=151 // pred_check_branch
              %1378 = sbr.rel (0) target = $region160
            $region159: #{custom-call.2} parent=151 // pred_region
              loop: start=0, step=1, limit=1
              $region161: #{custom-call.2} parent=159 // loop_pre_header
                _
              $region162: #{custom-call.2} parent=159 // loop_header
                %s1381 = sphi 0, %s1385
                %p1382 = scmp.ge.s32.totalorder %s1381, 1
                %s1386 = sphi %s1313, %s1313
                %s1387 = sphi %s1372, %s1372
              $region163: #{custom-call.2} parent=159 // loop_header_branch
                %1384 = sbr.rel (%p1382) target = $region167
              $region164: #{custom-call.2} parent=159 // loop_body
                %v1388 = vld [vmem:[%s1386] sm:$0xf]
                %1389 = vst [vmem:[%s1387] sm:$0xf] %v1388
              $region165: #{custom-call.2} parent=159 // loop_footer
                %s1385 = sadd.s32 1, %s1381
              $region166: #{custom-call.2} parent=159 // loop_footer_branch
                %1380 = sbr.rel target = $region162
              $region167: #{custom-call.2} parent=159 // loop_exit
                _
            $region160: #{custom-call.2} parent=151 // pred_fallthru
              _
          $region152: #{custom-call.2} parent=147 // pred_fallthru
            _
          %1403 = vnop
        $region148: #{custom-call.2} parent=95 // pred_fallthru
          _
        %s1404 = smul.addr %s17, 16
        %s1405 = scalar_lea.vmem %s6, %s1404
        // Predicated region
        $region179: #{custom-call.2} parent=95 // pred_check
          _
        $region180: #{custom-call.2} parent=95 // pred_check_branch
          %1407 = sbr.rel (0) target = $region182
        $region181: #{custom-call.2} parent=95 // pred_region
          // Predicated region
          $region183: #{custom-call.2} parent=181 // pred_check
            _
          $region184: #{custom-call.2} parent=181 // pred_check_branch
            %1409 = sbr.rel (0) target = $region186
          $region185: #{custom-call.2} parent=181 // pred_region
            loop: start=0, step=1, limit=1
            $region187: #{custom-call.2} parent=185 // loop_pre_header
              _
            $region188: #{custom-call.2} parent=185 // loop_header
              %s1411 = sphi 0, %s1415
              %p1412 = scmp.ge.s32.totalorder %s1411, 1
              %s1416 = sphi %s1317, %s1317
              %s1417 = sphi %s1405, %s1405
            $region189: #{custom-call.2} parent=185 // loop_header_branch
              %1414 = sbr.rel (%p1412) target = $region193
            $region190: #{custom-call.2} parent=185 // loop_body
              %v1418 = vld [vmem:[%s1416] sm:$0xff]
              %1419 = vst [vmem:[%s1417] sm:$0xff] %v1418
              %v1420 = vld [vmem:[%s1416 + $0x8] sm:$0xff]
              %1421 = vst [vmem:[%s1417 + $0x8] sm:$0xff] %v1420
            $region191: #{custom-call.2} parent=185 // loop_footer
              %s1415 = sadd.s32 1, %s1411
            $region192: #{custom-call.2} parent=185 // loop_footer_branch
              %1410 = sbr.rel target = $region188
            $region193: #{custom-call.2} parent=185 // loop_exit
              _
          $region186: #{custom-call.2} parent=181 // pred_fallthru
            _
          // Predicated region
          $region194: #{custom-call.2} parent=181 // pred_check
            _
          $region195: #{custom-call.2} parent=181 // pred_check_branch
            %1423 = sbr.rel target = $region197
          $region196: #{custom-call.2} parent=181 // pred_region
            _
          $region197: #{custom-call.2} parent=181 // pred_fallthru
            _
        $region182: #{custom-call.2} parent=95 // pred_fallthru
          _
        %1424 = vnop
        %s1425 = smul.addr %s17, 16
        %s1426 = scalar_lea.vmem %s7, %s1425
        // Predicated region
        $region198: #{custom-call.2} parent=95 // pred_check
          _
        $region199: #{custom-call.2} parent=95 // pred_check_branch
          %1428 = sbr.rel (0) target = $region201
        $region200: #{custom-call.2} parent=95 // pred_region
          // Predicated region
          $region202: #{custom-call.2} parent=200 // pred_check
            _
          $region203: #{custom-call.2} parent=200 // pred_check_branch
            %1430 = sbr.rel (0) target = $region205
          $region204: #{custom-call.2} parent=200 // pred_region
            loop: start=0, step=1, limit=1
            $region206: #{custom-call.2} parent=204 // loop_pre_header
              _
            $region207: #{custom-call.2} parent=204 // loop_header
              %s1432 = sphi 0, %s1436
              %p1433 = scmp.ge.s32.totalorder %s1432, 1
              %s1437 = sphi %s1321, %s1321
              %s1438 = sphi %s1426, %s1426
            $region208: #{custom-call.2} parent=204 // loop_header_branch
              %1435 = sbr.rel (%p1433) target = $region212
            $region209: #{custom-call.2} parent=204 // loop_body
              %v1439 = vld [vmem:[%s1437] sm:$0xff]
              %1440 = vst [vmem:[%s1438] sm:$0xff] %v1439
              %v1441 = vld [vmem:[%s1437 + $0x8] sm:$0xff]
              %1442 = vst [vmem:[%s1438 + $0x8] sm:$0xff] %v1441
            $region210: #{custom-call.2} parent=204 // loop_footer
              %s1436 = sadd.s32 1, %s1432
            $region211: #{custom-call.2} parent=204 // loop_footer_branch
              %1431 = sbr.rel target = $region207
            $region212: #{custom-call.2} parent=204 // loop_exit
              _
          $region205: #{custom-call.2} parent=200 // pred_fallthru
            _
          // Predicated region
          $region213: #{custom-call.2} parent=200 // pred_check
            _
          $region214: #{custom-call.2} parent=200 // pred_check_branch
            %1444 = sbr.rel target = $region216
          $region215: #{custom-call.2} parent=200 // pred_region
            _
          $region216: #{custom-call.2} parent=200 // pred_fallthru
            _
        $region201: #{custom-call.2} parent=95 // pred_fallthru
          _
        %1445 = vnop
        %s1446 = smul.addr %s17, 16
        %s1447 = scalar_lea.vmem %s8, %s1446
        // Predicated region
        $region217: #{custom-call.2} parent=95 // pred_check
          _
        $region218: #{custom-call.2} parent=95 // pred_check_branch
          %1449 = sbr.rel (0) target = $region220
        $region219: #{custom-call.2} parent=95 // pred_region
          // Predicated region
          $region221: #{custom-call.2} parent=219 // pred_check
            _
          $region222: #{custom-call.2} parent=219 // pred_check_branch
            %1451 = sbr.rel (0) target = $region224
          $region223: #{custom-call.2} parent=219 // pred_region
            loop: start=0, step=1, limit=1
            $region225: #{custom-call.2} parent=223 // loop_pre_header
              _
            $region226: #{custom-call.2} parent=223 // loop_header
              %s1453 = sphi 0, %s1457
              %p1454 = scmp.ge.s32.totalorder %s1453, 1
              %s1458 = sphi %s1325, %s1325
              %s1459 = sphi %s1447, %s1447
            $region227: #{custom-call.2} parent=223 // loop_header_branch
              %1456 = sbr.rel (%p1454) target = $region231
            $region228: #{custom-call.2} parent=223 // loop_body
              %v1460 = vld [vmem:[%s1458] sm:$0xff]
              %1461 = vst [vmem:[%s1459] sm:$0xff] %v1460
              %v1462 = vld [vmem:[%s1458 + $0x8] sm:$0xff]
              %1463 = vst [vmem:[%s1459 + $0x8] sm:$0xff] %v1462
            $region229: #{custom-call.2} parent=223 // loop_footer
              %s1457 = sadd.s32 1, %s1453
            $region230: #{custom-call.2} parent=223 // loop_footer_branch
              %1452 = sbr.rel target = $region226
            $region231: #{custom-call.2} parent=223 // loop_exit
              _
          $region224: #{custom-call.2} parent=219 // pred_fallthru
            _
          // Predicated region
          $region232: #{custom-call.2} parent=219 // pred_check
            _
          $region233: #{custom-call.2} parent=219 // pred_check_branch
            %1465 = sbr.rel target = $region235
          $region234: #{custom-call.2} parent=219 // pred_region
            _
          $region235: #{custom-call.2} parent=219 // pred_fallthru
            _
        $region220: #{custom-call.2} parent=95 // pred_fallthru
          _
        %1466 = vnop
        %s1467 = smul.addr %s17, 16
        %s1468 = scalar_lea.vmem %s9, %s1467
        // Predicated region
        $region236: #{custom-call.2} parent=95 // pred_check
          _
        $region237: #{custom-call.2} parent=95 // pred_check_branch
          %1470 = sbr.rel (0) target = $region239
        $region238: #{custom-call.2} parent=95 // pred_region
          // Predicated region
          $region240: #{custom-call.2} parent=238 // pred_check
            _
          $region241: #{custom-call.2} parent=238 // pred_check_branch
            %1472 = sbr.rel (0) target = $region243
          $region242: #{custom-call.2} parent=238 // pred_region
            loop: start=0, step=1, limit=1
            $region244: #{custom-call.2} parent=242 // loop_pre_header
              _
            $region245: #{custom-call.2} parent=242 // loop_header
              %s1474 = sphi 0, %s1478
              %p1475 = scmp.ge.s32.totalorder %s1474, 1
              %s1479 = sphi %s1329, %s1329
              %s1480 = sphi %s1468, %s1468
            $region246: #{custom-call.2} parent=242 // loop_header_branch
              %1477 = sbr.rel (%p1475) target = $region250
            $region247: #{custom-call.2} parent=242 // loop_body
              %v1481 = vld [vmem:[%s1479] sm:$0xff]
              %1482 = vst [vmem:[%s1480] sm:$0xff] %v1481
              %v1483 = vld [vmem:[%s1479 + $0x8] sm:$0xff]
              %1484 = vst [vmem:[%s1480 + $0x8] sm:$0xff] %v1483
            $region248: #{custom-call.2} parent=242 // loop_footer
              %s1478 = sadd.s32 1, %s1474
            $region249: #{custom-call.2} parent=242 // loop_footer_branch
              %1473 = sbr.rel target = $region245
            $region250: #{custom-call.2} parent=242 // loop_exit
              _
          $region243: #{custom-call.2} parent=238 // pred_fallthru
            _
          // Predicated region
          $region251: #{custom-call.2} parent=238 // pred_check
            _
          $region252: #{custom-call.2} parent=238 // pred_check_branch
            %1486 = sbr.rel target = $region254
          $region253: #{custom-call.2} parent=238 // pred_region
            _
          $region254: #{custom-call.2} parent=238 // pred_fallthru
            _
        $region239: #{custom-call.2} parent=95 // pred_fallthru
          _
        %1487 = vnop
      $region96: #{custom-call.2} parent=5 // pred_fallthru
        _
      %p1488 = scmp.le.s32.totalorder 2, %s12
      // Predicated region
      $region255: #{custom-call.2} parent=5 // pred_check
        %p1489 = pneg %p1488
      $region256: #{custom-call.2} parent=5 // pred_check_branch
        %1491 = sbr.rel (%p1489) target = $region258
      $region257: #{custom-call.2} parent=5 // pred_region
        %s1492 = ssub.s32 %s12, 2
        // Predicated region
        $region259: #{custom-call.2} parent=257 // pred_check
          %p1493 = pneg %p43
        $region260: #{custom-call.2} parent=257 // pred_check_branch
          %1495 = sbr.rel (%p1493) target = $region262
        $region261: #{custom-call.2} parent=257 // pred_region
          %s1496 = sand.u32 %s28, 1
          %s1497 = sand.u32 %s28, 1
          %s1498 = smul.addr %s1497, 4
          %s1499 = scalar_lea.vmem [#allocation5], %s1498
        $region262: #{custom-call.2} parent=257 // pred_fallthru
          _
        // Predicated region
        $region263: #{custom-call.2} parent=257 // pred_check
          %p1500 = pneg %p71
        $region264: #{custom-call.2} parent=257 // pred_check_branch
          %1502 = sbr.rel (%p1500) target = $region266
        $region265: #{custom-call.2} parent=257 // pred_region
          %s1503 = sand.u32 %s56, 1
          %s1504 = sand.u32 %s56, 1
          %s1505 = smul.addr %s1504, 4
          %s1506 = scalar_lea.vmem [#allocation7], %s1505
        $region266: #{custom-call.2} parent=257 // pred_fallthru
          _
        %s1507 = sand.u32 %s18, 1
        %s1508 = sand.u32 %s18, 1
        %s1509 = smul.addr %s1508, 16
        %s1510 = scalar_lea.vmem [#allocation8], %s1509
        %s1511 = sand.u32 %s18, 1
        %s1512 = sand.u32 %s18, 1
        %s1513 = smul.addr %s1512, 16
        %s1514 = scalar_lea.vmem [#allocation9], %s1513
        %s1515 = sand.u32 %s18, 1
        %s1516 = sand.u32 %s18, 1
        %s1517 = smul.addr %s1516, 16
        %s1518 = scalar_lea.vmem [#allocation10], %s1517
        %s1519 = sand.u32 %s18, 1
        %s1520 = sand.u32 %s18, 1
        %s1521 = smul.addr %s1520, 16
        %s1522 = scalar_lea.vmem [#allocation11], %s1521
      $region258: #{custom-call.2} parent=5 // pred_fallthru
        _
    $region6: #{custom-call.2} parent=1 // loop_footer
      %s16 = sadd.s32 1, %s12
    $region7: #{custom-call.2} parent=1 // loop_footer_branch
      %11 = sbr.rel target = $region3
    $region8: #{custom-call.2} parent=1 // loop_exit
      _

// kernel: eig_forward.3
$region0: #{eig_forward.3}
  #allocation0 [shape = 'u32[]', space=smem, size = 0x4, offset = 0x4, fixed_abs, tag = 'smem constant byte address 0x4 - core index']
  #allocation1 [shape = 'u32[144,128]{1,0:T(1,128)}', space=vmem, size = 0x12000, scoped, tag = 'internal scratch']
  #allocation2 [shape = 'f32[32,128]{1,0:T(8,128)}', space=vmem, size = 0x4000, scoped, tag = 'scratch operand']
  %s0 = inlined_call_operand.vmem [shape: f32[32,128], index: 0, kind: input, shape index: {}]
  %s1 = inlined_call_operand.vmem [shape: f32[128,128], index: 1, kind: input, shape index: {}]
  %s2 = inlined_call_operand.vmem [shape: f32[32,128], index: 2, kind: output, shape index: {}]
  %s3 = sld [smem:[#allocation0]]
  $region26: #{eig_forward.3} parent=0
    _
  %s5 = ssub.s32 1, %s3
  %s6 = scalar_select 0, %s5, %s3
  // Predicated region
  $region2: #{eig_forward.3} parent=0 // pred_check
    _
  $region3: #{eig_forward.3} parent=0 // pred_check_branch
    %8 = sbr.rel (0) target = $region5
  $region4: #{eig_forward.3} parent=0 // pred_region
    _
  $region5: #{eig_forward.3} parent=0 // pred_fallthru
    _
  // Predicated region
  $region6: #{eig_forward.3} parent=0 // pred_check
    _
  $region7: #{eig_forward.3} parent=0 // pred_check_branch
    %10 = sbr.rel (0) target = $region9
  $region8: #{eig_forward.3} parent=0 // pred_region
    _
  $region9: #{eig_forward.3} parent=0 // pred_fallthru
    _
  %p11 = scmp.eq.s32.totalorder 0, 0
  // Predicated region
  $region10: #{eig_forward.3} parent=0 // pred_check
    %p12 = pneg %p11
  $region11: #{eig_forward.3} parent=0 // pred_check_branch
    %14 = sbr.rel (%p12) target = $region13
  $region12: #{eig_forward.3} parent=0 // pred_region
    %15 = vst [vmem:[#allocation2] sm:$0xff] 0.0
    %16 = vst [vmem:[#allocation2 + $0x8] sm:$0xff] 0.0
    %17 = vst [vmem:[#allocation2 + $0x10] sm:$0xff] 0.0
    %18 = vst [vmem:[#allocation2 + $0x18] sm:$0xff] 0.0
  $region13: #{eig_forward.3} parent=0 // pred_fallthru
    _
  %v19 = vld [vmem:[#allocation2] sm:$0xff]
  %v20 = vld [vmem:[#allocation2 + $0x8] sm:$0xff]
  %v21 = vld [vmem:[#allocation2 + $0x10] sm:$0xff]
  %v22 = vld [vmem:[#allocation2 + $0x18] sm:$0xff]
  %v23 = vld [vmem:[%s0] sm:$0xff]
  %v24 = vld [vmem:[%s0 + $0x8] sm:$0xff]
  %v25 = vld [vmem:[%s0 + $0x10] sm:$0xff]
  %v26 = vld [vmem:[%s0 + $0x18] sm:$0xff]
  %v27 = vld [vmem:[%s1] sm:$0xff]
  %v28 = vld [vmem:[%s1 + $0x8] sm:$0xff]
  %v29 = vld [vmem:[%s1 + $0x10] sm:$0xff]
  %v30 = vld [vmem:[%s1 + $0x18] sm:$0xff]
  %v31 = vld [vmem:[%s1 + $0x20] sm:$0xff]
  %v32 = vld [vmem:[%s1 + $0x28] sm:$0xff]
  %v33 = vld [vmem:[%s1 + $0x30] sm:$0xff]
  %v34 = vld [vmem:[%s1 + $0x38] sm:$0xff]
  %v35 = vld [vmem:[%s1 + $0x40] sm:$0xff]
  %v36 = vld [vmem:[%s1 + $0x48] sm:$0xff]
  %v37 = vld [vmem:[%s1 + $0x50] sm:$0xff]
  %v38 = vld [vmem:[%s1 + $0x58] sm:$0xff]
  %v39 = vld [vmem:[%s1 + $0x60] sm:$0xff]
  %v40 = vld [vmem:[%s1 + $0x68] sm:$0xff]
  %v41 = vld [vmem:[%s1 + $0x70] sm:$0xff]
  %v42 = vld [vmem:[%s1 + $0x78] sm:$0xff]
  %43 = vmatprep.subr.mxu0 0.0
  %44 = vmatpush1.msra.mxu0 %v27
  %45 = vmatprep.subr.mxu0 0.0
  %46 = vmatpush1.msra.mxu0 %v28
  %47 = vmatprep.subr.mxu0 0.0
  %48 = vmatpush1.msra.mxu0 %v29
  %49 = vmatprep.subr.mxu0 0.0
  %50 = vmatpush1.msra.mxu0 %v30
  %51 = vmatprep.subr.mxu0 0.0
  %52 = vmatpush1.msra.mxu0 %v31
  %53 = vmatprep.subr.mxu0 0.0
  %54 = vmatpush1.msra.mxu0 %v32
  %55 = vmatprep.subr.mxu0 0.0
  %56 = vmatpush1.msra.mxu0 %v33
  %57 = vmatprep.subr.mxu0 0.0
  %58 = vmatpush1.msra.mxu0 %v34
  %59 = vmatprep.subr.mxu0 0.0
  %60 = vmatpush1.msra.mxu0 %v35
  %61 = vmatprep.subr.mxu0 0.0
  %62 = vmatpush1.msra.mxu0 %v36
  %63 = vmatprep.subr.mxu0 0.0
  %64 = vmatpush1.msra.mxu0 %v37
  %65 = vmatprep.subr.mxu0 0.0
  %66 = vmatpush1.msra.mxu0 %v38
  %67 = vmatprep.subr.mxu0 0.0
  %68 = vmatpush1.msra.mxu0 %v39
  %69 = vmatprep.subr.mxu0 0.0
  %70 = vmatpush1.msra.mxu0 %v40
  %71 = vmatprep.subr.mxu0 0.0
  %72 = vmatpush1.msra.mxu0 %v41
  %73 = vmatprep.subr.mxu0 0.0
  %74 = vmatpush1.msra.mxu0 %v42
  %75 = vmatprep.subr.mxu0 0.0
  %76 = vmatpush1.msra.mxu0 0.0
  %77 = vmatprep.subr.mxu0 0.0
  %78 = vmatpush1.msra.mxu0 0.0
  %79 = vmatprep.subr.mxu0 0.0
  %80 = vmatpush1.msra.mxu0 0.0
  %81 = vmatprep.subr.mxu0 0.0
  %82 = vmatpush1.msra.mxu0 0.0
  %83 = vmatprep.subr.mxu0 0.0
  %84 = vmatpush1.msra.mxu0 0.0
  %85 = vmatprep.subr.mxu0 0.0
  %86 = vmatpush1.msra.mxu0 0.0
  %87 = vmatprep.subr.mxu0 0.0
  %88 = vmatpush1.msra.mxu0 0.0
  %89 = vmatprep.subr.mxu0 0.0
  %90 = vmatpush1.msra.mxu0 0.0
  %91 = vmatprep.subr.mxu0 0.0
  %92 = vmatpush1.msra.mxu0 0.0
  %93 = vmatprep.subr.mxu0 0.0
  %94 = vmatpush1.msra.mxu0 0.0
  %95 = vmatprep.subr.mxu0 0.0
  %96 = vmatpush1.msra.mxu0 0.0
  %97 = vmatprep.subr.mxu0 0.0
  %98 = vmatpush1.msra.mxu0 0.0
  %99 = vmatprep.subr.mxu0 0.0
  %100 = vmatpush1.msra.mxu0 0.0
  %101 = vmatprep.subr.mxu0 0.0
  %102 = vmatpush1.msra.mxu0 0.0
  %103 = vmatprep.subr.mxu0 0.0
  %104 = vmatpush1.msra.mxu0 0.0
  %105 = vmatprep.subr.mxu0 0.0
  %106 = vmatpush1.msra.mxu0 0.0
  %107 = vmatprep.mubr.f32.mxu0 0.0
  %108 = vmatmul.mubr.f32.gmra.mrb[0].mxu0 %v23
  %v109 = vpop.f32.mrb[0].mxu0
  %v110 = vadd.f32 0.0, %v109
  %v111 = vpop.f32.mrb[0].mxu0
  %112 = vmatprep.mubr.f32.mxu0 0.0
  %113 = vmatmul.mubr.f32.gmra.mrb[0].mxu0 %v24
  %v114 = vpop.f32.mrb[0].mxu0
  %v115 = vadd.f32 0.0, %v114
  %v116 = vpop.f32.mrb[0].mxu0
  %117 = vmatprep.mubr.f32.mxu0 0.0
  %118 = vmatmul.mubr.f32.gmra.mrb[0].mxu0 %v25
  %v119 = vpop.f32.mrb[0].mxu0
  %v120 = vadd.f32 0.0, %v119
  %v121 = vpop.f32.mrb[0].mxu0
  %122 = vmatprep.mubr.f32.mxu0 0.0
  %123 = vmatmul.mubr.f32.gmra.mrb[0].mxu0 %v26
  %v124 = vpop.f32.mrb[0].mxu0
  %v125 = vadd.f32 0.0, %v124
  %v126 = vpop.f32.mrb[0].mxu0
  %127 = vdwg.mxu0
  %v128 = vadd.f32 %v19, %v110
  %v129 = vadd.f32 %v20, %v115
  %v130 = vadd.f32 %v21, %v120
  %v131 = vadd.f32 %v22, %v125
  %132 = vst [vmem:[#allocation2] sm:$0xff] %v128
  %133 = vst [vmem:[#allocation2 + $0x8] sm:$0xff] %v129
  %134 = vst [vmem:[#allocation2 + $0x10] sm:$0xff] %v130
  %135 = vst [vmem:[#allocation2 + $0x18] sm:$0xff] %v131
  // Predicated region
  $region14: #{eig_forward.3} parent=0 // pred_check
    %p136 = pneg %p11
  $region15: #{eig_forward.3} parent=0 // pred_check_branch
    %138 = sbr.rel (%p136) target = $region17
  $region16: #{eig_forward.3} parent=0 // pred_region
    %v139 = vld [vmem:[#allocation2] sm:$0xff]
    %v140 = vld [vmem:[#allocation2 + $0x8] sm:$0xff]
    %v141 = vld [vmem:[#allocation2 + $0x10] sm:$0xff]
    %v142 = vld [vmem:[#allocation2 + $0x18] sm:$0xff]
    %143 = vst [vmem:[%s2] sm:$0xff] %v139
    %144 = vst [vmem:[%s2 + $0x8] sm:$0xff] %v140
    %145 = vst [vmem:[%s2 + $0x10] sm:$0xff] %v141
    %146 = vst [vmem:[%s2 + $0x18] sm:$0xff] %v142
  $region17: #{eig_forward.3} parent=0 // pred_fallthru
    _
  // Predicated region
  $region18: #{eig_forward.3} parent=0 // pred_check
    _
  $region19: #{eig_forward.3} parent=0 // pred_check_branch
    %148 = sbr.rel (0) target = $region21
  $region20: #{eig_forward.3} parent=0 // pred_region
    _
  $region21: #{eig_forward.3} parent=0 // pred_fallthru
    _
  // Predicated region
  $region22: #{eig_forward.3} parent=0 // pred_check
    _
  $region23: #{eig_forward.3} parent=0 // pred_check_branch
    %150 = sbr.rel (0) target = $region25
  $region24: #{eig_forward.3} parent=0 // pred_region
    _
  $region25: #{eig_forward.3} parent=0 // pred_fallthru
    _

// kernel: eig_forward.4
$region0: #{eig_forward.4}
  #allocation0 [shape = 'u32[]', space=smem, size = 0x4, offset = 0x4, fixed_abs, tag = 'smem constant byte address 0x4 - core index']
  #allocation1 [shape = 'u32[144,128]{1,0:T(1,128)}', space=vmem, size = 0x12000, scoped, tag = 'internal scratch']
  #allocation2 [shape = 'f32[128,128]{1,0:T(8,128)}', space=vmem, size = 0x10000, scoped, tag = 'scratch operand']
  %s0 = inlined_call_operand.vmem [shape: f32[128,128], index: 0, kind: input, shape index: {}]
  %s1 = inlined_call_operand.vmem [shape: f32[128,128], index: 1, kind: input, shape index: {}]
  %s2 = inlined_call_operand.vmem [shape: f32[128,128], index: 2, kind: output, shape index: {}]
  %s3 = sld [smem:[#allocation0]]
  $region26: #{eig_forward.4} parent=0
    _
  %s5 = ssub.s32 1, %s3
  %s6 = scalar_select 0, %s5, %s3
  // Predicated region
  $region2: #{eig_forward.4} parent=0 // pred_check
    _
  $region3: #{eig_forward.4} parent=0 // pred_check_branch
    %8 = sbr.rel (0) target = $region5
  $region4: #{eig_forward.4} parent=0 // pred_region
    _
  $region5: #{eig_forward.4} parent=0 // pred_fallthru
    _
  // Predicated region
  $region6: #{eig_forward.4} parent=0 // pred_check
    _
  $region7: #{eig_forward.4} parent=0 // pred_check_branch
    %10 = sbr.rel (0) target = $region9
  $region8: #{eig_forward.4} parent=0 // pred_region
    _
  $region9: #{eig_forward.4} parent=0 // pred_fallthru
    _
  %p11 = scmp.eq.s32.totalorder 0, 0
  // Predicated region
  $region10: #{eig_forward.4} parent=0 // pred_check
    %p12 = pneg %p11
  $region11: #{eig_forward.4} parent=0 // pred_check_branch
    %14 = sbr.rel (%p12) target = $region13
  $region12: #{eig_forward.4} parent=0 // pred_region
    %15 = vst [vmem:[#allocation2] sm:$0xff] 0.0
    %16 = vst [vmem:[#allocation2 + $0x8] sm:$0xff] 0.0
    %17 = vst [vmem:[#allocation2 + $0x10] sm:$0xff] 0.0
    %18 = vst [vmem:[#allocation2 + $0x18] sm:$0xff] 0.0
    %19 = vst [vmem:[#allocation2 + $0x20] sm:$0xff] 0.0
    %20 = vst [vmem:[#allocation2 + $0x28] sm:$0xff] 0.0
    %21 = vst [vmem:[#allocation2 + $0x30] sm:$0xff] 0.0
    %22 = vst [vmem:[#allocation2 + $0x38] sm:$0xff] 0.0
    %23 = vst [vmem:[#allocation2 + $0x40] sm:$0xff] 0.0
    %24 = vst [vmem:[#allocation2 + $0x48] sm:$0xff] 0.0
    %25 = vst [vmem:[#allocation2 + $0x50] sm:$0xff] 0.0
    %26 = vst [vmem:[#allocation2 + $0x58] sm:$0xff] 0.0
    %27 = vst [vmem:[#allocation2 + $0x60] sm:$0xff] 0.0
    %28 = vst [vmem:[#allocation2 + $0x68] sm:$0xff] 0.0
    %29 = vst [vmem:[#allocation2 + $0x70] sm:$0xff] 0.0
    %30 = vst [vmem:[#allocation2 + $0x78] sm:$0xff] 0.0
  $region13: #{eig_forward.4} parent=0 // pred_fallthru
    _
  %v31 = vld [vmem:[#allocation2] sm:$0xff]
  %v32 = vld [vmem:[#allocation2 + $0x8] sm:$0xff]
  %v33 = vld [vmem:[#allocation2 + $0x10] sm:$0xff]
  %v34 = vld [vmem:[#allocation2 + $0x18] sm:$0xff]
  %v35 = vld [vmem:[#allocation2 + $0x20] sm:$0xff]
  %v36 = vld [vmem:[#allocation2 + $0x28] sm:$0xff]
  %v37 = vld [vmem:[#allocation2 + $0x30] sm:$0xff]
  %v38 = vld [vmem:[#allocation2 + $0x38] sm:$0xff]
  %v39 = vld [vmem:[#allocation2 + $0x40] sm:$0xff]
  %v40 = vld [vmem:[#allocation2 + $0x48] sm:$0xff]
  %v41 = vld [vmem:[#allocation2 + $0x50] sm:$0xff]
  %v42 = vld [vmem:[#allocation2 + $0x58] sm:$0xff]
  %v43 = vld [vmem:[#allocation2 + $0x60] sm:$0xff]
  %v44 = vld [vmem:[#allocation2 + $0x68] sm:$0xff]
  %v45 = vld [vmem:[#allocation2 + $0x70] sm:$0xff]
  %v46 = vld [vmem:[#allocation2 + $0x78] sm:$0xff]
  %v47 = vld [vmem:[%s0] sm:$0xff]
  %v48 = vld [vmem:[%s0 + $0x8] sm:$0xff]
  %v49 = vld [vmem:[%s0 + $0x10] sm:$0xff]
  %v50 = vld [vmem:[%s0 + $0x18] sm:$0xff]
  %v51 = vld [vmem:[%s0 + $0x20] sm:$0xff]
  %v52 = vld [vmem:[%s0 + $0x28] sm:$0xff]
  %v53 = vld [vmem:[%s0 + $0x30] sm:$0xff]
  %v54 = vld [vmem:[%s0 + $0x38] sm:$0xff]
  %v55 = vld [vmem:[%s0 + $0x40] sm:$0xff]
  %v56 = vld [vmem:[%s0 + $0x48] sm:$0xff]
  %v57 = vld [vmem:[%s0 + $0x50] sm:$0xff]
  %v58 = vld [vmem:[%s0 + $0x58] sm:$0xff]
  %v59 = vld [vmem:[%s0 + $0x60] sm:$0xff]
  %v60 = vld [vmem:[%s0 + $0x68] sm:$0xff]
  %v61 = vld [vmem:[%s0 + $0x70] sm:$0xff]
  %v62 = vld [vmem:[%s0 + $0x78] sm:$0xff]
  %v63 = vld [vmem:[%s1] sm:$0xff]
  %v64 = vld [vmem:[%s1 + $0x8] sm:$0xff]
  %v65 = vld [vmem:[%s1 + $0x10] sm:$0xff]
  %v66 = vld [vmem:[%s1 + $0x18] sm:$0xff]
  %v67 = vld [vmem:[%s1 + $0x20] sm:$0xff]
  %v68 = vld [vmem:[%s1 + $0x28] sm:$0xff]
  %v69 = vld [vmem:[%s1 + $0x30] sm:$0xff]
  %v70 = vld [vmem:[%s1 + $0x38] sm:$0xff]
  %v71 = vld [vmem:[%s1 + $0x40] sm:$0xff]
  %v72 = vld [vmem:[%s1 + $0x48] sm:$0xff]
  %v73 = vld [vmem:[%s1 + $0x50] sm:$0xff]
  %v74 = vld [vmem:[%s1 + $0x58] sm:$0xff]
  %v75 = vld [vmem:[%s1 + $0x60] sm:$0xff]
  %v76 = vld [vmem:[%s1 + $0x68] sm:$0xff]
  %v77 = vld [vmem:[%s1 + $0x70] sm:$0xff]
  %v78 = vld [vmem:[%s1 + $0x78] sm:$0xff]
  %79 = vmatprep.subr.mxu0 0.0
  %80 = vmatpush1.msra.mxu0 %v63
  %81 = vmatprep.subr.mxu0 0.0
  %82 = vmatpush1.msra.mxu0 %v64
  %83 = vmatprep.subr.mxu0 0.0
  %84 = vmatpush1.msra.mxu0 %v65
  %85 = vmatprep.subr.mxu0 0.0
  %86 = vmatpush1.msra.mxu0 %v66
  %87 = vmatprep.subr.mxu0 0.0
  %88 = vmatpush1.msra.mxu0 %v67
  %89 = vmatprep.subr.mxu0 0.0
  %90 = vmatpush1.msra.mxu0 %v68
  %91 = vmatprep.subr.mxu0 0.0
  %92 = vmatpush1.msra.mxu0 %v69
  %93 = vmatprep.subr.mxu0 0.0
  %94 = vmatpush1.msra.mxu0 %v70
  %95 = vmatprep.subr.mxu0 0.0
  %96 = vmatpush1.msra.mxu0 %v71
  %97 = vmatprep.subr.mxu0 0.0
  %98 = vmatpush1.msra.mxu0 %v72
  %99 = vmatprep.subr.mxu0 0.0
  %100 = vmatpush1.msra.mxu0 %v73
  %101 = vmatprep.subr.mxu0 0.0
  %102 = vmatpush1.msra.mxu0 %v74
  %103 = vmatprep.subr.mxu0 0.0
  %104 = vmatpush1.msra.mxu0 %v75
  %105 = vmatprep.subr.mxu0 0.0
  %106 = vmatpush1.msra.mxu0 %v76
  %107 = vmatprep.subr.mxu0 0.0
  %108 = vmatpush1.msra.mxu0 %v77
  %109 = vmatprep.subr.mxu0 0.0
  %110 = vmatpush1.msra.mxu0 %v78
  %111 = vmatprep.subr.mxu0 0.0
  %112 = vmatpush1.msra.mxu0 0.0
  %113 = vmatprep.subr.mxu0 0.0
  %114 = vmatpush1.msra.mxu0 0.0
  %115 = vmatprep.subr.mxu0 0.0
  %116 = vmatpush1.msra.mxu0 0.0
  %117 = vmatprep.subr.mxu0 0.0
  %118 = vmatpush1.msra.mxu0 0.0
  %119 = vmatprep.subr.mxu0 0.0
  %120 = vmatpush1.msra.mxu0 0.0
  %121 = vmatprep.subr.mxu0 0.0
  %122 = vmatpush1.msra.mxu0 0.0
  %123 = vmatprep.subr.mxu0 0.0
  %124 = vmatpush1.msra.mxu0 0.0
  %125 = vmatprep.subr.mxu0 0.0
  %126 = vmatpush1.msra.mxu0 0.0
  %127 = vmatprep.subr.mxu0 0.0
  %128 = vmatpush1.msra.mxu0 0.0
  %129 = vmatprep.subr.mxu0 0.0
  %130 = vmatpush1.msra.mxu0 0.0
  %131 = vmatprep.subr.mxu0 0.0
  %132 = vmatpush1.msra.mxu0 0.0
  %133 = vmatprep.subr.mxu0 0.0
  %134 = vmatpush1.msra.mxu0 0.0
  %135 = vmatprep.subr.mxu0 0.0
  %136 = vmatpush1.msra.mxu0 0.0
  %137 = vmatprep.subr.mxu0 0.0
  %138 = vmatpush1.msra.mxu0 0.0
  %139 = vmatprep.subr.mxu0 0.0
  %140 = vmatpush1.msra.mxu0 0.0
  %141 = vmatprep.subr.mxu0 0.0
  %142 = vmatpush1.msra.mxu0 0.0
  %143 = vmatprep.mubr.f32.mxu0 0.0
  %144 = vmatmul.mubr.f32.gmra.mrb[0].mxu0 %v47
  %v145 = vpop.f32.mrb[0].mxu0
  %v146 = vadd.f32 0.0, %v145
  %v147 = vpop.f32.mrb[0].mxu0
  %148 = vmatprep.mubr.f32.mxu0 0.0
  %149 = vmatmul.mubr.f32.gmra.mrb[0].mxu0 %v48
  %v150 = vpop.f32.mrb[0].mxu0
  %v151 = vadd.f32 0.0, %v150
  %v152 = vpop.f32.mrb[0].mxu0
  %153 = vmatprep.mubr.f32.mxu0 0.0
  %154 = vmatmul.mubr.f32.gmra.mrb[0].mxu0 %v49
  %v155 = vpop.f32.mrb[0].mxu0
  %v156 = vadd.f32 0.0, %v155
  %v157 = vpop.f32.mrb[0].mxu0
  %158 = vmatprep.mubr.f32.mxu0 0.0
  %159 = vmatmul.mubr.f32.gmra.mrb[0].mxu0 %v50
  %v160 = vpop.f32.mrb[0].mxu0
  %v161 = vadd.f32 0.0, %v160
  %v162 = vpop.f32.mrb[0].mxu0
  %163 = vmatprep.mubr.f32.mxu0 0.0
  %164 = vmatmul.mubr.f32.gmra.mrb[0].mxu0 %v51
  %v165 = vpop.f32.mrb[0].mxu0
  %v166 = vadd.f32 0.0, %v165
  %v167 = vpop.f32.mrb[0].mxu0
  %168 = vmatprep.mubr.f32.mxu0 0.0
  %169 = vmatmul.mubr.f32.gmra.mrb[0].mxu0 %v52
  %v170 = vpop.f32.mrb[0].mxu0
  %v171 = vadd.f32 0.0, %v170
  %v172 = vpop.f32.mrb[0].mxu0
  %173 = vmatprep.mubr.f32.mxu0 0.0
  %174 = vmatmul.mubr.f32.gmra.mrb[0].mxu0 %v53
  %v175 = vpop.f32.mrb[0].mxu0
  %v176 = vadd.f32 0.0, %v175
  %v177 = vpop.f32.mrb[0].mxu0
  %178 = vmatprep.mubr.f32.mxu0 0.0
  %179 = vmatmul.mubr.f32.gmra.mrb[0].mxu0 %v54
  %v180 = vpop.f32.mrb[0].mxu0
  %v181 = vadd.f32 0.0, %v180
  %v182 = vpop.f32.mrb[0].mxu0
  %183 = vmatprep.mubr.f32.mxu0 0.0
  %184 = vmatmul.mubr.f32.gmra.mrb[0].mxu0 %v55
  %v185 = vpop.f32.mrb[0].mxu0
  %v186 = vadd.f32 0.0, %v185
  %v187 = vpop.f32.mrb[0].mxu0
  %188 = vmatprep.mubr.f32.mxu0 0.0
  %189 = vmatmul.mubr.f32.gmra.mrb[0].mxu0 %v56
  %v190 = vpop.f32.mrb[0].mxu0
  %v191 = vadd.f32 0.0, %v190
  %v192 = vpop.f32.mrb[0].mxu0
  %193 = vmatprep.mubr.f32.mxu0 0.0
  %194 = vmatmul.mubr.f32.gmra.mrb[0].mxu0 %v57
  %v195 = vpop.f32.mrb[0].mxu0
  %v196 = vadd.f32 0.0, %v195
  %v197 = vpop.f32.mrb[0].mxu0
  %198 = vmatprep.mubr.f32.mxu0 0.0
  %199 = vmatmul.mubr.f32.gmra.mrb[0].mxu0 %v58
  %v200 = vpop.f32.mrb[0].mxu0
  %v201 = vadd.f32 0.0, %v200
  %v202 = vpop.f32.mrb[0].mxu0
  %203 = vmatprep.mubr.f32.mxu0 0.0
  %204 = vmatmul.mubr.f32.gmra.mrb[0].mxu0 %v59
  %v205 = vpop.f32.mrb[0].mxu0
  %v206 = vadd.f32 0.0, %v205
  %v207 = vpop.f32.mrb[0].mxu0
  %208 = vmatprep.mubr.f32.mxu0 0.0
  %209 = vmatmul.mubr.f32.gmra.mrb[0].mxu0 %v60
  %v210 = vpop.f32.mrb[0].mxu0
  %v211 = vadd.f32 0.0, %v210
  %v212 = vpop.f32.mrb[0].mxu0
  %213 = vmatprep.mubr.f32.mxu0 0.0
  %214 = vmatmul.mubr.f32.gmra.mrb[0].mxu0 %v61
  %v215 = vpop.f32.mrb[0].mxu0
  %v216 = vadd.f32 0.0, %v215
  %v217 = vpop.f32.mrb[0].mxu0
  %218 = vmatprep.mubr.f32.mxu0 0.0
  %219 = vmatmul.mubr.f32.gmra.mrb[0].mxu0 %v62
  %v220 = vpop.f32.mrb[0].mxu0
  %v221 = vadd.f32 0.0, %v220
  %v222 = vpop.f32.mrb[0].mxu0
  %223 = vdwg.mxu0
  %v224 = vadd.f32 %v31, %v146
  %v225 = vadd.f32 %v32, %v151
  %v226 = vadd.f32 %v33, %v156
  %v227 = vadd.f32 %v34, %v161
  %v228 = vadd.f32 %v35, %v166
  %v229 = vadd.f32 %v36, %v171
  %v230 = vadd.f32 %v37, %v176
  %v231 = vadd.f32 %v38, %v181
  %v232 = vadd.f32 %v39, %v186
  %v233 = vadd.f32 %v40, %v191
  %v234 = vadd.f32 %v41, %v196
  %v235 = vadd.f32 %v42, %v201
  %v236 = vadd.f32 %v43, %v206
  %v237 = vadd.f32 %v44, %v211
  %v238 = vadd.f32 %v45, %v216
  %v239 = vadd.f32 %v46, %v221
  %240 = vst [vmem:[#allocation2] sm:$0xff] %v224
  %241 = vst [vmem:[#allocation2 + $0x8] sm:$0xff] %v225
  %242 = vst [vmem:[#allocation2 + $0x10] sm:$0xff] %v226
  %243 = vst [vmem:[#allocation2 + $0x18] sm:$0xff] %v227
  %244 = vst [vmem:[#allocation2 + $0x20] sm:$0xff] %v228
  %245 = vst [vmem:[#allocation2 + $0x28] sm:$0xff] %v229
  %246 = vst [vmem:[#allocation2 + $0x30] sm:$0xff] %v230
  %247 = vst [vmem:[#allocation2 + $0x38] sm:$0xff] %v231
  %248 = vst [vmem:[#allocation2 + $0x40] sm:$0xff] %v232
  %249 = vst [vmem:[#allocation2 + $0x48] sm:$0xff] %v233
  %250 = vst [vmem:[#allocation2 + $0x50] sm:$0xff] %v234
  %251 = vst [vmem:[#allocation2 + $0x58] sm:$0xff] %v235
  %252 = vst [vmem:[#allocation2 + $0x60] sm:$0xff] %v236
  %253 = vst [vmem:[#allocation2 + $0x68] sm:$0xff] %v237
  %254 = vst [vmem:[#allocation2 + $0x70] sm:$0xff] %v238
  %255 = vst [vmem:[#allocation2 + $0x78] sm:$0xff] %v239
  // Predicated region
  $region14: #{eig_forward.4} parent=0 // pred_check
    %p256 = pneg %p11
  $region15: #{eig_forward.4} parent=0 // pred_check_branch
    %258 = sbr.rel (%p256) target = $region17
  $region16: #{eig_forward.4} parent=0 // pred_region
    %v259 = vld [vmem:[#allocation2] sm:$0xff]
    %v260 = vld [vmem:[#allocation2 + $0x8] sm:$0xff]
    %v261 = vld [vmem:[#allocation2 + $0x10] sm:$0xff]
    %v262 = vld [vmem:[#allocation2 + $0x18] sm:$0xff]
    %v263 = vld [vmem:[#allocation2 + $0x20] sm:$0xff]
    %v264 = vld [vmem:[#allocation2 + $0x28] sm:$0xff]
    %v265 = vld [vmem:[#allocation2 + $0x30] sm:$0xff]
    %v266 = vld [vmem:[#allocation2 + $0x38] sm:$0xff]
    %v267 = vld [vmem:[#allocation2 + $0x40] sm:$0xff]
    %v268 = vld [vmem:[#allocation2 + $0x48] sm:$0xff]
    %v269 = vld [vmem:[#allocation2 + $0x50] sm:$0xff]
    %v270 = vld [vmem:[#allocation2 + $0x58] sm:$0xff]
    %v271 = vld [vmem:[#allocation2 + $0x60] sm:$0xff]
    %v272 = vld [vmem:[#allocation2 + $0x68] sm:$0xff]
    %v273 = vld [vmem:[#allocation2 + $0x70] sm:$0xff]
    %v274 = vld [vmem:[#allocation2 + $0x78] sm:$0xff]
    %275 = vst [vmem:[%s2] sm:$0xff] %v259
    %276 = vst [vmem:[%s2 + $0x8] sm:$0xff] %v260
    %277 = vst [vmem:[%s2 + $0x10] sm:$0xff] %v261
    %278 = vst [vmem:[%s2 + $0x18] sm:$0xff] %v262
    %279 = vst [vmem:[%s2 + $0x20] sm:$0xff] %v263
    %280 = vst [vmem:[%s2 + $0x28] sm:$0xff] %v264
    %281 = vst [vmem:[%s2 + $0x30] sm:$0xff] %v265
    %282 = vst [vmem:[%s2 + $0x38] sm:$0xff] %v266
    %283 = vst [vmem:[%s2 + $0x40] sm:$0xff] %v267
    %284 = vst [vmem:[%s2 + $0x48] sm:$0xff] %v268
    %285 = vst [vmem:[%s2 + $0x50] sm:$0xff] %v269
    %286 = vst [vmem:[%s2 + $0x58] sm:$0xff] %v270
    %287 = vst [vmem:[%s2 + $0x60] sm:$0xff] %v271
    %288 = vst [vmem:[%s2 + $0x68] sm:$0xff] %v272
    %289 = vst [vmem:[%s2 + $0x70] sm:$0xff] %v273
    %290 = vst [vmem:[%s2 + $0x78] sm:$0xff] %v274
  $region17: #{eig_forward.4} parent=0 // pred_fallthru
    _
  // Predicated region
  $region18: #{eig_forward.4} parent=0 // pred_check
    _
  $region19: #{eig_forward.4} parent=0 // pred_check_branch
    %292 = sbr.rel (0) target = $region21
  $region20: #{eig_forward.4} parent=0 // pred_region
    _
  $region21: #{eig_forward.4} parent=0 // pred_fallthru
    _
  // Predicated region
  $region22: #{eig_forward.4} parent=0 // pred_check
    _
  $region23: #{eig_forward.4} parent=0 // pred_check_branch
    %294 = sbr.rel (0) target = $region25
  $region24: #{eig_forward.4} parent=0 // pred_region
    _
  $region25: #{eig_forward.4} parent=0 // pred_fallthru
    _

</llo_original>
